<compile_context>
chip_gen: v5e
topology: v5e:2x2
jax: 0.10.0
libtpu: 0.0.40
codegen_flags: <defaults>
</compile_context>

<pallas_src>
import functools

import jax
import jax.numpy as jnp
from jax.experimental import pallas as pl
from jax.experimental.pallas import tpu as pltpu

# ----------------------------- config (small, ViT-like) ----------------------
IMG = 16          # input spatial size
PATCH = 8         # patch size  -> grid 2x2, N = 4 patches
IN_CH = 3         # RGB, like ScaleMAE
EMBED = 32        # embedding dim (divisible by 4 for 2D sincos)
DEPTH = 2         # transformer blocks
HEADS = 4         # attention heads
MLP_RATIO = 4
EPS = 1e-6        # timm ViT LayerNorm eps

N_PATCH = (IMG // PATCH) ** 2
# NOTE: -1e30 is safe for f32 scores; if scores are ever computed in bf16 use a
# dtype-aware constant (e.g. jnp.finfo(dtype).min / 2).
NEG_INF = -1e30


# ----------------------------- Pallas kernel ----------------------------------
def _layernorm(v, g, b):
    mu = jnp.mean(v, axis=-1, keepdims=True)
    var = jnp.mean((v - mu) ** 2, axis=-1, keepdims=True)
    return (v - mu) * jax.lax.rsqrt(var + EPS) * g + b


def _encoder_kernel(px_ref, pw_ref, tok0_ref,
                    ln1g_ref, ln1b_ref, qkvw_ref, qkvb_ref, pjw_ref, pjb_ref,
                    ln2g_ref, ln2b_ref, f1w_ref, f1b_ref, f2w_ref, f2b_ref,
                    ng_ref, nb_ref, o_ref, *, depth, num_heads, valid_tokens):
    tp = px_ref.shape[1]               # padded token rows per image (multiple of 8)
    d = tok0_ref.shape[-1]             # embedding dim
    hd = d // num_heads                # head dim

    # Patch-embed matmul fused with cls-token / pos-embed / conv-bias addition.
    # tok0 = pos + [cls_token | patch_bias | 0-pad]; cls / pad slots of px are zero rows.
    x = jnp.dot(px_ref[0], pw_ref[...],
                preferred_element_type=jnp.float32) + tok0_ref[0]

    # Additive key mask for the padded token rows — pure index arithmetic, no HBM
    # mask buffer.  Batch separation is handled by the grid (one image per step).
    col = jax.lax.broadcasted_iota(jnp.int32, (tp, tp), 1)
    key_bias = jnp.where(col < valid_tokens, 0.0, NEG_INF).astype(jnp.float32)

    for l in range(depth):             # static unroll over transformer blocks (toy depth)
        # -------- attention --------
        xn = _layernorm(x, ln1g_ref[l], ln1b_ref[l])
        # single full-width MXU matmul for q,k,v; attention scale pre-folded into q cols
        qkv = jnp.dot(xn, qkvw_ref[l],
                      preferred_element_type=jnp.float32) + qkvb_ref[l]     # (tp, 3D)

        ctx_heads = []
        for h in range(num_heads):     # per-head lane views of the qkv slab
            qh = qkv[:, h * hd:(h + 1) * hd]                    # (tp, hd)
            kh = qkv[:, d + h * hd:d + (h + 1) * hd]
            vh = qkv[:, 2 * d + h * hd:2 * d + (h + 1) * hd]
            # scores = qh @ kh^T  (contract last dims of both -> no explicit transpose)
            s = jax.lax.dot_general(qh, kh, (((1,), (1,)), ((), ())),
                                    preferred_element_type=jnp.float32) + key_bias
            s = s - jnp.max(s, axis=-1, keepdims=True)
            p = jnp.exp(s)
            # approximate reciprocal goes to the EUP slot (documented tiny deviation
            # from PyTorch's exact divide; inference-safe).
            p = p * pl.reciprocal(jnp.sum(p, axis=-1, keepdims=True), approx=True)
            ctx_heads.append(jnp.dot(p, vh, preferred_element_type=jnp.float32))
        ctx = jnp.concatenate(ctx_heads, axis=-1)               # (tp, D), head-major lanes

        # output projection: head reduction happens inside ONE full-width MXU contraction
        x = x + jnp.dot(ctx, pjw_ref[l],
                        preferred_element_type=jnp.float32) + pjb_ref[l]

        # -------- MLP --------
        xn = _layernorm(x, ln2g_ref[l], ln2b_ref[l])
        hmid = jnp.dot(xn, f1w_ref[l],
                       preferred_element_type=jnp.float32) + f1b_ref[l]
        # exact erf GELU, matching PyTorch nn.GELU default
        hmid = 0.5 * hmid * (1.0 + jax.lax.erf(hmid * 0.7071067811865476))
        x = x + jnp.dot(hmid, f2w_ref[l],
                        preferred_element_type=jnp.float32) + f2b_ref[l]

    # final LayerNorm, one slab store per image.
    # TODO(synk): D=32 (<128 lanes) means masked vst stores in this toy config; at real
    # ScaleMAE D=1024 the output is already lane-dense.
    o_ref[0] = _layernorm(x, ng_ref[...], nb_ref[...])


# ----------------------------- host-side glue ----------------------------------
def _get_1d_sincos(embed_dim, pos_flat):
    omega = jnp.arange(embed_dim // 2, dtype=jnp.float32) / (embed_dim / 2.0)
    omega = 1.0 / (10000.0 ** omega)
    out = jnp.einsum("m,d->md", pos_flat, omega)
    return jnp.concatenate([jnp.sin(out), jnp.cos(out)], axis=1)


def get_2d_sincos_pos_embed_with_resolution(embed_dim, grid_size, res, cls_token=True):
    """ScaleMAE GSD-aware positional embedding: grid coords scaled by per-sample res."""
    grid_h = jnp.arange(grid_size, dtype=jnp.float32)
    grid_w = jnp.arange(grid_size, dtype=jnp.float32)
    gw, gh = jnp.meshgrid(grid_w, grid_h)                      # 'xy' (w first), as in MAE
    grid = jnp.stack([gw, gh], axis=0)                         # (2, gs, gs)
    grid = jnp.einsum("chw,n->cnhw", grid, res)                # (2, B, gs, gs)
    B = res.shape[0]
    emb_h = _get_1d_sincos(embed_dim // 2, grid[0].reshape(-1))
    emb_w = _get_1d_sincos(embed_dim // 2, grid[1].reshape(-1))
    emb = jnp.concatenate([emb_h, emb_w], axis=1).reshape(B, grid_size * grid_size, embed_dim)
    if cls_token:
        emb = jnp.concatenate([jnp.zeros((B, 1, embed_dim), jnp.float32), emb], axis=1)
    return emb


def _prep_block_weights(blocks):
    """Stack per-block params along DEPTH; fold the attention scale into q columns."""
    D = EMBED
    scale = (D // HEADS) ** -0.5

    def stack(i):
        return jnp.stack([blk[i] for blk in blocks], axis=0)

    ln1g, ln1b = stack(0), stack(1)            # (L, 1, D)
    qkvw, qkvb = stack(2), stack(3)            # (L, D, 3D), (L, 1, 3D)
    pjw, pjb = stack(4), stack(5)              # (L, D, D),  (L, 1, D)
    ln2g, ln2b = stack(6), stack(7)
    f1w, f1b = stack(8), stack(9)              # (L, D, HID), (L, 1, HID)
    f2w, f2b = stack(10), stack(11)            # (L, HID, D), (L, 1, D)

    # attention scale folded into the q third of the qkv weight / bias columns
    colscale = jnp.concatenate([jnp.full((D,), scale, jnp.float32),
                                jnp.ones((2 * D,), jnp.float32)])
    qkvw = qkvw * colscale[None, None, :]
    qkvb = qkvb * colscale[None, None, :]

    # TODO(synk): for production sizes store these as bf16 and stream one layer per
    # grid step (pl.Buffered pipelines on v6e); fp32-in-VMEM is fine at toy size.
    return (ln1g, ln1b, qkvw, qkvb, pjw, pjb, ln2g, ln2b, f1w, f1b, f2w, f2b)


def scalemae_forward(x, input_res, params):
    B, C, Himg, Wimg = x.shape
    gh, gw = Himg // PATCH, Wimg // PATCH
    N = gh * gw
    T = N + 1
    Tp = ((T + 7) // 8) * 8            # pad token rows to a sublane multiple of 8
    D = EMBED
    HID = MLP_RATIO * D
    CPP = C * PATCH * PATCH
    L = DEPTH

    # unfold patches with (c, ph, pw) ordering to match conv-weight reshape; prepend a
    # zero row for the cls slot and zero rows for the sublane padding (masked in-kernel).
    p = x.reshape(B, C, gh, PATCH, gw, PATCH).transpose(0, 2, 4, 1, 3, 5).reshape(B, N, CPP)
    patches_pad = jnp.pad(p, ((0, 0), (1, Tp - T), (0, 0))).astype(jnp.float32)   # (B, Tp, CPP)

    # GSD-aware pos embed + cls token + conv bias folded into one additive init slab
    pos = get_2d_sincos_pos_embed_with_resolution(D, gh, input_res, cls_token=True)  # (B, T, D)
    add = jnp.concatenate(
        [jnp.broadcast_to(params["cls_token"].reshape(1, 1, D), (B, 1, D)),
         jnp.broadcast_to(params["patch_b"].reshape(1, 1, D), (B, N, D))], axis=1)
    tok0 = jnp.pad(pos + add, ((0, 0), (0, Tp - T), (0, 0))).astype(jnp.float32)      # (B, Tp, D)

    packed = _prep_block_weights(params["blocks"])

    def full(shape):            # grid-invariant (weight) blocks: fetched once
        return pl.BlockSpec(shape, lambda b, _s=shape: (0,) * len(_s))

    def per_img(shape):         # one image's rows per grid step
        return pl.BlockSpec(shape, lambda b, _s=shape: (b,) + (0,) * (len(_s) - 1))

    kernel = functools.partial(_encoder_kernel, depth=DEPTH, num_heads=HEADS,
                               valid_tokens=T)
    y = pl.pallas_call(
        kernel,
        grid=(B,),
        in_specs=[
            per_img((1, Tp, CPP)),                       # patches (zero cls / pad rows)
            full((CPP, D)),                              # patch-embed weight
            per_img((1, Tp, D)),                         # pos + cls + bias init slab
            full((L, 1, D)), full((L, 1, D)),            # ln1 gamma / beta
            full((L, D, 3 * D)), full((L, 1, 3 * D)),    # qkv weight / bias
            full((L, D, D)), full((L, 1, D)),            # attn proj weight / bias
            full((L, 1, D)), full((L, 1, D)),            # ln2 gamma / beta
            full((L, D, HID)), full((L, 1, HID)),        # mlp fc1 weight / bias
            full((L, HID, D)), full((L, 1, D)),          # mlp fc2 weight / bias
            full((1, D)), full((1, D)),                  # final norm gamma / beta
        ],
        out_specs=per_img((1, Tp, D)),
        out_shape=jax.ShapeDtypeStruct((B, Tp, D), jnp.float32),
        compiler_params=pltpu.CompilerParams(
            dimension_semantics=("parallel",),           # batch shards over v7x's 2 TCs
            vmem_limit_bytes=32 * 1024 * 1024,
        ),
    )(patches_pad, params["patch_w"], tok0, *packed,
      params["norm_g"], params["norm_b"])

    y = y[:, :T]                 # drop sublane padding rows
    # global_pool=False, cls_token=True -> (cls features, patch features)
    return y[:, 0], y[:, 1:]


# ----------------------------- deterministic params ---------------------------
def init_params(key):
    def nrm(k, shape, scale=0.02):
        return scale * jax.random.normal(k, shape, dtype=jnp.float32)

    keys = jax.random.split(key, 4 + DEPTH)
    D, HID = EMBED, MLP_RATIO * EMBED
    params = {
        "patch_w": nrm(keys[0], (IN_CH * PATCH * PATCH, D)),   # conv (D,C,P,P).reshape(D,-1).T
        "patch_b": jnp.zeros((D,), jnp.float32),
        "cls_token": nrm(keys[1], (1, 1, D)),
        "norm_g": jnp.ones((1, D), jnp.float32),
        "norm_b": jnp.zeros((1, D), jnp.float32),
        "blocks": [],
    }
    for i in range(DEPTH):
        bk = jax.random.split(keys[4 + i], 4)
        params["blocks"].append((
            jnp.ones((1, D), jnp.float32),       # ln1 gamma
            jnp.zeros((1, D), jnp.float32),      # ln1 beta
            nrm(bk[0], (D, 3 * D)),              # qkv weight
            jnp.zeros((1, 3 * D), jnp.float32),  # qkv bias
            nrm(bk[1], (D, D)),                  # attn proj weight
            jnp.zeros((1, D), jnp.float32),      # attn proj bias
            jnp.ones((1, D), jnp.float32),       # ln2 gamma
            jnp.zeros((1, D), jnp.float32),      # ln2 beta
            nrm(bk[2], (D, HID)),                # mlp fc1 weight
            jnp.zeros((1, HID), jnp.float32),    # mlp fc1 bias
            nrm(bk[3], (HID, D)),                # mlp fc2 weight
            jnp.zeros((1, D), jnp.float32),      # mlp fc2 bias
        ))
    return params


# ----------------------------- main -------------------------------------------
if __name__ == "__main__":
    key = jax.random.PRNGKey(0)
    kx, kp = jax.random.split(key, 2)
    x = jax.random.normal(kx, (2, IN_CH, IMG, IMG), dtype=jnp.float32)   # NCHW like PyTorch
    input_res = jnp.array([1.0, 2.0], dtype=jnp.float32)                 # per-sample GSD
    params = init_params(kp)

    cls_feat, patch_feat = jax.jit(scalemae_forward)(x, input_res, params)
    jax.block_until_ready((cls_feat, patch_feat))

    assert cls_feat.shape == (2, EMBED) and cls_feat.dtype == jnp.float32
    assert patch_feat.shape == (2, N_PATCH, EMBED) and patch_feat.dtype == jnp.float32
    print("KERNEL_OK")
</pallas_src>

<mosaic_0001>
module attributes {stable_mosaic.version = 11 : i64} {
  func.func @_encoder_kernel(%arg0: i32, %arg1: memref<1x8x192xf32, #tpu.memory_space<vmem>>, %arg2: memref<192x32xf32, #tpu.memory_space<vmem>>, %arg3: memref<1x8x32xf32, #tpu.memory_space<vmem>>, %arg4: memref<2x1x32xf32, #tpu.memory_space<vmem>>, %arg5: memref<2x1x32xf32, #tpu.memory_space<vmem>>, %arg6: memref<2x32x96xf32, #tpu.memory_space<vmem>>, %arg7: memref<2x1x96xf32, #tpu.memory_space<vmem>>, %arg8: memref<2x32x32xf32, #tpu.memory_space<vmem>>, %arg9: memref<2x1x32xf32, #tpu.memory_space<vmem>>, %arg10: memref<2x1x32xf32, #tpu.memory_space<vmem>>, %arg11: memref<2x1x32xf32, #tpu.memory_space<vmem>>, %arg12: memref<2x32x128xf32, #tpu.memory_space<vmem>>, %arg13: memref<2x1x128xf32, #tpu.memory_space<vmem>>, %arg14: memref<2x128x32xf32, #tpu.memory_space<vmem>>, %arg15: memref<2x1x32xf32, #tpu.memory_space<vmem>>, %arg16: memref<1x32xf32, #tpu.memory_space<vmem>>, %arg17: memref<1x32xf32, #tpu.memory_space<vmem>>, %arg18: memref<1x8x32xf32, #tpu.memory_space<vmem>>) attributes {dimension_semantics = [#tpu.dimension_semantics<parallel>], iteration_bounds = array<i64: 2>, scalar_prefetch = 0 : i64, scratch_operands = 0 : i64, tpu.core_type = #tpu.core_type<tc>, window_params = [{transform_indices = @transform_0, window_bounds = array<i64: 1, 8, 192>}, {pipeline_mode = #tpu.pipeline_mode<synchronous>, transform_indices = @transform_1, window_bounds = array<i64: 192, 32>}, {transform_indices = @transform_2, window_bounds = array<i64: 1, 8, 32>}, {pipeline_mode = #tpu.pipeline_mode<synchronous>, transform_indices = @transform_3, window_bounds = array<i64: 2, 1, 32>}, {pipeline_mode = #tpu.pipeline_mode<synchronous>, transform_indices = @transform_4, window_bounds = array<i64: 2, 1, 32>}, {pipeline_mode = #tpu.pipeline_mode<synchronous>, transform_indices = @transform_5, window_bounds = array<i64: 2, 32, 96>}, {pipeline_mode = #tpu.pipeline_mode<synchronous>, transform_indices = @transform_6, window_bounds = array<i64: 2, 1, 96>}, {pipeline_mode = #tpu.pipeline_mode<synchronous>, transform_indices = @transform_7, window_bounds = array<i64: 2, 32, 32>}, {pipeline_mode = #tpu.pipeline_mode<synchronous>, transform_indices = @transform_8, window_bounds = array<i64: 2, 1, 32>}, {pipeline_mode = #tpu.pipeline_mode<synchronous>, transform_indices = @transform_9, window_bounds = array<i64: 2, 1, 32>}, {pipeline_mode = #tpu.pipeline_mode<synchronous>, transform_indices = @transform_10, window_bounds = array<i64: 2, 1, 32>}, {pipeline_mode = #tpu.pipeline_mode<synchronous>, transform_indices = @transform_11, window_bounds = array<i64: 2, 32, 128>}, {pipeline_mode = #tpu.pipeline_mode<synchronous>, transform_indices = @transform_12, window_bounds = array<i64: 2, 1, 128>}, {pipeline_mode = #tpu.pipeline_mode<synchronous>, transform_indices = @transform_13, window_bounds = array<i64: 2, 128, 32>}, {pipeline_mode = #tpu.pipeline_mode<synchronous>, transform_indices = @transform_14, window_bounds = array<i64: 2, 1, 32>}, {pipeline_mode = #tpu.pipeline_mode<synchronous>, transform_indices = @transform_15, window_bounds = array<i64: 1, 32>}, {pipeline_mode = #tpu.pipeline_mode<synchronous>, transform_indices = @transform_16, window_bounds = array<i64: 1, 32>}, {transform_indices = @transform_17, window_bounds = array<i64: 1, 8, 32>}]} {
    %c0 = arith.constant 0 : index
    %c0_0 = arith.constant 0 : index
    %c0_1 = arith.constant 0 : index
    %0 = vector.load %arg1[%c0, %c0_0, %c0_1] : memref<1x8x192xf32, #tpu.memory_space<vmem>>, vector<1x8x192xf32>
    %1 = vector.shape_cast %0 : vector<1x8x192xf32> to vector<8x192xf32>
    %c0_2 = arith.constant 0 : index
    %c0_3 = arith.constant 0 : index
    %2 = vector.load %arg2[%c0_2, %c0_3] : memref<192x32xf32, #tpu.memory_space<vmem>>, vector<192x32xf32>
    %cst = arith.constant dense<0.000000e+00> : vector<8x32xf32>
    %3 = tpu.matmul %1, %2, %cst {dimension_numbers = #tpu.dot_dimension_numbers<[1], [0], [0], [1], [0, 0, 1, 1], [], []>} : vector<8x192xf32>, vector<192x32xf32>, vector<8x32xf32> -> vector<8x32xf32>
    %c0_4 = arith.constant 0 : index
    %c0_5 = arith.constant 0 : index
    %c0_6 = arith.constant 0 : index
    %4 = vector.load %arg3[%c0_4, %c0_5, %c0_6] : memref<1x8x32xf32, #tpu.memory_space<vmem>>, vector<1x8x32xf32>
    %5 = vector.shape_cast %4 : vector<1x8x32xf32> to vector<8x32xf32>
    %6 = arith.addf %3, %5 : vector<8x32xf32>
    %7 = tpu.iota {dimensions = array<i32: 1>} : vector<8x8xi32>
    %c5_i32 = arith.constant 5 : i32
    %8 = vector.broadcast %c5_i32 : i32 to vector<8x8xi32>
    %9 = arith.cmpi slt, %7, %8 : vector<8x8xi32>
    %cst_7 = arith.constant 0.000000e+00 : f32
    %cst_8 = arith.constant -1.000000e+30 : f32
    %10 = vector.broadcast %cst_7 : f32 to vector<8x8xf32>
    %11 = vector.broadcast %cst_8 : f32 to vector<8x8xf32>
    %12 = arith.select %9, %10, %11 : vector<8x8xi1>, vector<8x8xf32>
    %c0_9 = arith.constant 0 : index
    %c0_10 = arith.constant 0 : index
    %c0_11 = arith.constant 0 : index
    %13 = vector.load %arg4[%c0_9, %c0_10, %c0_11] : memref<2x1x32xf32, #tpu.memory_space<vmem>>, vector<1x1x32xf32>
    %14 = vector.shape_cast %13 : vector<1x1x32xf32> to vector<1x32xf32>
    %c0_12 = arith.constant 0 : index
    %c0_13 = arith.constant 0 : index
    %c0_14 = arith.constant 0 : index
    %15 = vector.load %arg5[%c0_12, %c0_13, %c0_14] : memref<2x1x32xf32, #tpu.memory_space<vmem>>, vector<1x1x32xf32>
    %16 = vector.shape_cast %15 : vector<1x1x32xf32> to vector<1x32xf32>
    %cst_15 = arith.constant dense<0.000000e+00> : vector<8xf32>
    %17 = vector.multi_reduction <add>, %6, %cst_15 [1] : vector<8x32xf32> to vector<8xf32>
    %18 = vector.shape_cast %17 : vector<8xf32> to vector<8x1xf32>
    %cst_16 = arith.constant 3.200000e+01 : f32
    %19 = vector.broadcast %cst_16 : f32 to vector<8x1xf32>
    %20 = arith.divf %18, %19 : vector<8x1xf32>
    %21 = vector.broadcast %20 : vector<8x1xf32> to vector<8x32xf32>
    %22 = arith.subf %6, %21 : vector<8x32xf32>
    %23 = arith.mulf %22, %22 : vector<8x32xf32>
    %cst_17 = arith.constant dense<0.000000e+00> : vector<8xf32>
    %24 = vector.multi_reduction <add>, %23, %cst_17 [1] : vector<8x32xf32> to vector<8xf32>
    %25 = vector.shape_cast %24 : vector<8xf32> to vector<8x1xf32>
    %cst_18 = arith.constant 3.200000e+01 : f32
    %26 = vector.broadcast %cst_18 : f32 to vector<8x1xf32>
    %27 = arith.divf %25, %26 : vector<8x1xf32>
    %28 = vector.broadcast %20 : vector<8x1xf32> to vector<8x32xf32>
    %29 = arith.subf %6, %28 : vector<8x32xf32>
    %cst_19 = arith.constant 9.99999997E-7 : f32
    %30 = vector.broadcast %cst_19 : f32 to vector<8x1xf32>
    %31 = arith.addf %27, %30 : vector<8x1xf32>
    %32 = math.rsqrt %31 : vector<8x1xf32>
    %33 = vector.broadcast %32 : vector<8x1xf32> to vector<8x32xf32>
    %34 = arith.mulf %29, %33 : vector<8x32xf32>
    %35 = vector.broadcast %14 : vector<1x32xf32> to vector<8x32xf32>
    %36 = arith.mulf %34, %35 : vector<8x32xf32>
    %37 = vector.broadcast %16 : vector<1x32xf32> to vector<8x32xf32>
    %38 = arith.addf %36, %37 : vector<8x32xf32>
    %c0_20 = arith.constant 0 : index
    %c0_21 = arith.constant 0 : index
    %c0_22 = arith.constant 0 : index
    %39 = vector.load %arg6[%c0_20, %c0_21, %c0_22] : memref<2x32x96xf32, #tpu.memory_space<vmem>>, vector<1x32x96xf32>
    %40 = vector.shape_cast %39 : vector<1x32x96xf32> to vector<32x96xf32>
    %cst_23 = arith.constant dense<0.000000e+00> : vector<8x96xf32>
    %41 = tpu.matmul %38, %40, %cst_23 {dimension_numbers = #tpu.dot_dimension_numbers<[1], [0], [0], [1], [0, 0, 1, 1], [], []>} : vector<8x32xf32>, vector<32x96xf32>, vector<8x96xf32> -> vector<8x96xf32>
    %c0_24 = arith.constant 0 : index
    %c0_25 = arith.constant 0 : index
    %c0_26 = arith.constant 0 : index
    %42 = vector.load %arg7[%c0_24, %c0_25, %c0_26] : memref<2x1x96xf32, #tpu.memory_space<vmem>>, vector<1x1x96xf32>
    %43 = vector.shape_cast %42 : vector<1x1x96xf32> to vector<1x96xf32>
    %44 = vector.broadcast %43 : vector<1x96xf32> to vector<8x96xf32>
    %45 = arith.addf %41, %44 : vector<8x96xf32>
    %46 = vector.extract_strided_slice %45 {offsets = [0, 0], sizes = [8, 8], strides = [1, 1]} : vector<8x96xf32> to vector<8x8xf32>
    %47 = vector.extract_strided_slice %45 {offsets = [0, 32], sizes = [8, 8], strides = [1, 1]} : vector<8x96xf32> to vector<8x8xf32>
    %48 = vector.extract_strided_slice %45 {offsets = [0, 64], sizes = [8, 8], strides = [1, 1]} : vector<8x96xf32> to vector<8x8xf32>
    %cst_27 = arith.constant dense<0.000000e+00> : vector<8x8xf32>
    %49 = tpu.matmul %46, %47, %cst_27 {dimension_numbers = #tpu.dot_dimension_numbers<[1], [1], [0], [0], [0, 0, 1, 0], [], []>} : vector<8x8xf32>, vector<8x8xf32>, vector<8x8xf32> -> vector<8x8xf32>
    %50 = arith.addf %49, %12 : vector<8x8xf32>
    %cst_28 = arith.constant dense<0xFF800000> : vector<8xf32>
    %51 = vector.multi_reduction <maximumf>, %50, %cst_28 [1] : vector<8x8xf32> to vector<8xf32>
    %52 = vector.shape_cast %51 : vector<8xf32> to vector<8x1xf32>
    %53 = vector.broadcast %52 : vector<8x1xf32> to vector<8x8xf32>
    %54 = arith.subf %50, %53 : vector<8x8xf32>
    %55 = math.exp %54 : vector<8x8xf32>
    %cst_29 = arith.constant dense<0.000000e+00> : vector<8xf32>
    %56 = vector.multi_reduction <add>, %55, %cst_29 [1] : vector<8x8xf32> to vector<8xf32>
    %57 = vector.shape_cast %56 : vector<8xf32> to vector<8x1xf32>
    %58 = tpu.reciprocal %57 {approx = true} : vector<8x1xf32> -> vector<8x1xf32>
    %59 = vector.broadcast %58 : vector<8x1xf32> to vector<8x8xf32>
    %60 = arith.mulf %55, %59 : vector<8x8xf32>
    %cst_30 = arith.constant dense<0.000000e+00> : vector<8x8xf32>
    %61 = tpu.matmul %60, %48, %cst_30 {dimension_numbers = #tpu.dot_dimension_numbers<[1], [0], [0], [1], [0, 0, 1, 1], [], []>} : vector<8x8xf32>, vector<8x8xf32>, vector<8x8xf32> -> vector<8x8xf32>
    %62 = vector.extract_strided_slice %45 {offsets = [0, 8], sizes = [8, 8], strides = [1, 1]} : vector<8x96xf32> to vector<8x8xf32>
    %63 = vector.extract_strided_slice %45 {offsets = [0, 40], sizes = [8, 8], strides = [1, 1]} : vector<8x96xf32> to vector<8x8xf32>
    %64 = vector.extract_strided_slice %45 {offsets = [0, 72], sizes = [8, 8], strides = [1, 1]} : vector<8x96xf32> to vector<8x8xf32>
    %cst_31 = arith.constant dense<0.000000e+00> : vector<8x8xf32>
    %65 = tpu.matmul %62, %63, %cst_31 {dimension_numbers = #tpu.dot_dimension_numbers<[1], [1], [0], [0], [0, 0, 1, 0], [], []>} : vector<8x8xf32>, vector<8x8xf32>, vector<8x8xf32> -> vector<8x8xf32>
    %66 = arith.addf %65, %12 : vector<8x8xf32>
    %cst_32 = arith.constant dense<0xFF800000> : vector<8xf32>
    %67 = vector.multi_reduction <maximumf>, %66, %cst_32 [1] : vector<8x8xf32> to vector<8xf32>
    %68 = vector.shape_cast %67 : vector<8xf32> to vector<8x1xf32>
    %69 = vector.broadcast %68 : vector<8x1xf32> to vector<8x8xf32>
    %70 = arith.subf %66, %69 : vector<8x8xf32>
    %71 = math.exp %70 : vector<8x8xf32>
    %cst_33 = arith.constant dense<0.000000e+00> : vector<8xf32>
    %72 = vector.multi_reduction <add>, %71, %cst_33 [1] : vector<8x8xf32> to vector<8xf32>
    %73 = vector.shape_cast %72 : vector<8xf32> to vector<8x1xf32>
    %74 = tpu.reciprocal %73 {approx = true} : vector<8x1xf32> -> vector<8x1xf32>
    %75 = vector.broadcast %74 : vector<8x1xf32> to vector<8x8xf32>
    %76 = arith.mulf %71, %75 : vector<8x8xf32>
    %cst_34 = arith.constant dense<0.000000e+00> : vector<8x8xf32>
    %77 = tpu.matmul %76, %64, %cst_34 {dimension_numbers = #tpu.dot_dimension_numbers<[1], [0], [0], [1], [0, 0, 1, 1], [], []>} : vector<8x8xf32>, vector<8x8xf32>, vector<8x8xf32> -> vector<8x8xf32>
    %78 = vector.extract_strided_slice %45 {offsets = [0, 16], sizes = [8, 8], strides = [1, 1]} : vector<8x96xf32> to vector<8x8xf32>
    %79 = vector.extract_strided_slice %45 {offsets = [0, 48], sizes = [8, 8], strides = [1, 1]} : vector<8x96xf32> to vector<8x8xf32>
    %80 = vector.extract_strided_slice %45 {offsets = [0, 80], sizes = [8, 8], strides = [1, 1]} : vector<8x96xf32> to vector<8x8xf32>
    %cst_35 = arith.constant dense<0.000000e+00> : vector<8x8xf32>
    %81 = tpu.matmul %78, %79, %cst_35 {dimension_numbers = #tpu.dot_dimension_numbers<[1], [1], [0], [0], [0, 0, 1, 0], [], []>} : vector<8x8xf32>, vector<8x8xf32>, vector<8x8xf32> -> vector<8x8xf32>
    %82 = arith.addf %81, %12 : vector<8x8xf32>
    %cst_36 = arith.constant dense<0xFF800000> : vector<8xf32>
    %83 = vector.multi_reduction <maximumf>, %82, %cst_36 [1] : vector<8x8xf32> to vector<8xf32>
    %84 = vector.shape_cast %83 : vector<8xf32> to vector<8x1xf32>
    %85 = vector.broadcast %84 : vector<8x1xf32> to vector<8x8xf32>
    %86 = arith.subf %82, %85 : vector<8x8xf32>
    %87 = math.exp %86 : vector<8x8xf32>
    %cst_37 = arith.constant dense<0.000000e+00> : vector<8xf32>
    %88 = vector.multi_reduction <add>, %87, %cst_37 [1] : vector<8x8xf32> to vector<8xf32>
    %89 = vector.shape_cast %88 : vector<8xf32> to vector<8x1xf32>
    %90 = tpu.reciprocal %89 {approx = true} : vector<8x1xf32> -> vector<8x1xf32>
    %91 = vector.broadcast %90 : vector<8x1xf32> to vector<8x8xf32>
    %92 = arith.mulf %87, %91 : vector<8x8xf32>
    %cst_38 = arith.constant dense<0.000000e+00> : vector<8x8xf32>
    %93 = tpu.matmul %92, %80, %cst_38 {dimension_numbers = #tpu.dot_dimension_numbers<[1], [0], [0], [1], [0, 0, 1, 1], [], []>} : vector<8x8xf32>, vector<8x8xf32>, vector<8x8xf32> -> vector<8x8xf32>
    %94 = vector.extract_strided_slice %45 {offsets = [0, 24], sizes = [8, 8], strides = [1, 1]} : vector<8x96xf32> to vector<8x8xf32>
    %95 = vector.extract_strided_slice %45 {offsets = [0, 56], sizes = [8, 8], strides = [1, 1]} : vector<8x96xf32> to vector<8x8xf32>
    %96 = vector.extract_strided_slice %45 {offsets = [0, 88], sizes = [8, 8], strides = [1, 1]} : vector<8x96xf32> to vector<8x8xf32>
    %cst_39 = arith.constant dense<0.000000e+00> : vector<8x8xf32>
    %97 = tpu.matmul %94, %95, %cst_39 {dimension_numbers = #tpu.dot_dimension_numbers<[1], [1], [0], [0], [0, 0, 1, 0], [], []>} : vector<8x8xf32>, vector<8x8xf32>, vector<8x8xf32> -> vector<8x8xf32>
    %98 = arith.addf %97, %12 : vector<8x8xf32>
    %cst_40 = arith.constant dense<0xFF800000> : vector<8xf32>
    %99 = vector.multi_reduction <maximumf>, %98, %cst_40 [1] : vector<8x8xf32> to vector<8xf32>
    %100 = vector.shape_cast %99 : vector<8xf32> to vector<8x1xf32>
    %101 = vector.broadcast %100 : vector<8x1xf32> to vector<8x8xf32>
    %102 = arith.subf %98, %101 : vector<8x8xf32>
    %103 = math.exp %102 : vector<8x8xf32>
    %cst_41 = arith.constant dense<0.000000e+00> : vector<8xf32>
    %104 = vector.multi_reduction <add>, %103, %cst_41 [1] : vector<8x8xf32> to vector<8xf32>
    %105 = vector.shape_cast %104 : vector<8xf32> to vector<8x1xf32>
    %106 = tpu.reciprocal %105 {approx = true} : vector<8x1xf32> -> vector<8x1xf32>
    %107 = vector.broadcast %106 : vector<8x1xf32> to vector<8x8xf32>
    %108 = arith.mulf %103, %107 : vector<8x8xf32>
    %cst_42 = arith.constant dense<0.000000e+00> : vector<8x8xf32>
    %109 = tpu.matmul %108, %96, %cst_42 {dimension_numbers = #tpu.dot_dimension_numbers<[1], [0], [0], [1], [0, 0, 1, 1], [], []>} : vector<8x8xf32>, vector<8x8xf32>, vector<8x8xf32> -> vector<8x8xf32>
    %110 = tpu.concatenate %61, %77, %93, %109 in 1 : vector<8x8xf32>, vector<8x8xf32>, vector<8x8xf32>, vector<8x8xf32> -> vector<8x32xf32>
    %c0_43 = arith.constant 0 : index
    %c0_44 = arith.constant 0 : index
    %c0_45 = arith.constant 0 : index
    %111 = vector.load %arg8[%c0_43, %c0_44, %c0_45] : memref<2x32x32xf32, #tpu.memory_space<vmem>>, vector<1x32x32xf32>
    %112 = vector.shape_cast %111 : vector<1x32x32xf32> to vector<32x32xf32>
    %cst_46 = arith.constant dense<0.000000e+00> : vector<8x32xf32>
    %113 = tpu.matmul %110, %112, %cst_46 {dimension_numbers = #tpu.dot_dimension_numbers<[1], [0], [0], [1], [0, 0, 1, 1], [], []>} : vector<8x32xf32>, vector<32x32xf32>, vector<8x32xf32> -> vector<8x32xf32>
    %114 = arith.addf %6, %113 : vector<8x32xf32>
    %c0_47 = arith.constant 0 : index
    %c0_48 = arith.constant 0 : index
    %c0_49 = arith.constant 0 : index
    %115 = vector.load %arg9[%c0_47, %c0_48, %c0_49] : memref<2x1x32xf32, #tpu.memory_space<vmem>>, vector<1x1x32xf32>
    %116 = vector.shape_cast %115 : vector<1x1x32xf32> to vector<1x32xf32>
    %117 = vector.broadcast %116 : vector<1x32xf32> to vector<8x32xf32>
    %118 = arith.addf %114, %117 : vector<8x32xf32>
    %c0_50 = arith.constant 0 : index
    %c0_51 = arith.constant 0 : index
    %c0_52 = arith.constant 0 : index
    %119 = vector.load %arg10[%c0_50, %c0_51, %c0_52] : memref<2x1x32xf32, #tpu.memory_space<vmem>>, vector<1x1x32xf32>
    %120 = vector.shape_cast %119 : vector<1x1x32xf32> to vector<1x32xf32>
    %c0_53 = arith.constant 0 : index
    %c0_54 = arith.constant 0 : index
    %c0_55 = arith.constant 0 : index
    %121 = vector.load %arg11[%c0_53, %c0_54, %c0_55] : memref<2x1x32xf32, #tpu.memory_space<vmem>>, vector<1x1x32xf32>
    %122 = vector.shape_cast %121 : vector<1x1x32xf32> to vector<1x32xf32>
    %cst_56 = arith.constant dense<0.000000e+00> : vector<8xf32>
    %123 = vector.multi_reduction <add>, %118, %cst_56 [1] : vector<8x32xf32> to vector<8xf32>
    %124 = vector.shape_cast %123 : vector<8xf32> to vector<8x1xf32>
    %cst_57 = arith.constant 3.200000e+01 : f32
    %125 = vector.broadcast %cst_57 : f32 to vector<8x1xf32>
    %126 = arith.divf %124, %125 : vector<8x1xf32>
    %127 = vector.broadcast %126 : vector<8x1xf32> to vector<8x32xf32>
    %128 = arith.subf %118, %127 : vector<8x32xf32>
    %129 = arith.mulf %128, %128 : vector<8x32xf32>
    %cst_58 = arith.constant dense<0.000000e+00> : vector<8xf32>
    %130 = vector.multi_reduction <add>, %129, %cst_58 [1] : vector<8x32xf32> to vector<8xf32>
    %131 = vector.shape_cast %130 : vector<8xf32> to vector<8x1xf32>
    %cst_59 = arith.constant 3.200000e+01 : f32
    %132 = vector.broadcast %cst_59 : f32 to vector<8x1xf32>
    %133 = arith.divf %131, %132 : vector<8x1xf32>
    %134 = vector.broadcast %126 : vector<8x1xf32> to vector<8x32xf32>
    %135 = arith.subf %118, %134 : vector<8x32xf32>
    %cst_60 = arith.constant 9.99999997E-7 : f32
    %136 = vector.broadcast %cst_60 : f32 to vector<8x1xf32>
    %137 = arith.addf %133, %136 : vector<8x1xf32>
    %138 = math.rsqrt %137 : vector<8x1xf32>
    %139 = vector.broadcast %138 : vector<8x1xf32> to vector<8x32xf32>
    %140 = arith.mulf %135, %139 : vector<8x32xf32>
    %141 = vector.broadcast %120 : vector<1x32xf32> to vector<8x32xf32>
    %142 = arith.mulf %140, %141 : vector<8x32xf32>
    %143 = vector.broadcast %122 : vector<1x32xf32> to vector<8x32xf32>
    %144 = arith.addf %142, %143 : vector<8x32xf32>
    %c0_61 = arith.constant 0 : index
    %c0_62 = arith.constant 0 : index
    %c0_63 = arith.constant 0 : index
    %145 = vector.load %arg12[%c0_61, %c0_62, %c0_63] : memref<2x32x128xf32, #tpu.memory_space<vmem>>, vector<1x32x128xf32>
    %146 = vector.shape_cast %145 : vector<1x32x128xf32> to vector<32x128xf32>
    %cst_64 = arith.constant dense<0.000000e+00> : vector<8x128xf32>
    %147 = tpu.matmul %144, %146, %cst_64 {dimension_numbers = #tpu.dot_dimension_numbers<[1], [0], [0], [1], [0, 0, 1, 1], [], []>} : vector<8x32xf32>, vector<32x128xf32>, vector<8x128xf32> -> vector<8x128xf32>
    %c0_65 = arith.constant 0 : index
    %c0_66 = arith.constant 0 : index
    %c0_67 = arith.constant 0 : index
    %148 = vector.load %arg13[%c0_65, %c0_66, %c0_67] : memref<2x1x128xf32, #tpu.memory_space<vmem>>, vector<1x1x128xf32>
    %149 = vector.shape_cast %148 : vector<1x1x128xf32> to vector<1x128xf32>
    %150 = vector.broadcast %149 : vector<1x128xf32> to vector<8x128xf32>
    %151 = arith.addf %147, %150 : vector<8x128xf32>
    %cst_68 = arith.constant 5.000000e-01 : f32
    %152 = vector.broadcast %cst_68 : f32 to vector<8x128xf32>
    %153 = arith.mulf %152, %151 : vector<8x128xf32>
    %cst_69 = arith.constant 0.707106769 : f32
    %154 = vector.broadcast %cst_69 : f32 to vector<8x128xf32>
    %155 = arith.mulf %151, %154 : vector<8x128xf32>
    %156 = math.erf %155 : vector<8x128xf32>
    %cst_70 = arith.constant 1.000000e+00 : f32
    %157 = vector.broadcast %cst_70 : f32 to vector<8x128xf32>
    %158 = arith.addf %157, %156 : vector<8x128xf32>
    %159 = arith.mulf %153, %158 : vector<8x128xf32>
    %c0_71 = arith.constant 0 : index
    %c0_72 = arith.constant 0 : index
    %c0_73 = arith.constant 0 : index
    %160 = vector.load %arg14[%c0_71, %c0_72, %c0_73] : memref<2x128x32xf32, #tpu.memory_space<vmem>>, vector<1x128x32xf32>
    %161 = vector.shape_cast %160 : vector<1x128x32xf32> to vector<128x32xf32>
    %cst_74 = arith.constant dense<0.000000e+00> : vector<8x32xf32>
    %162 = tpu.matmul %159, %161, %cst_74 {dimension_numbers = #tpu.dot_dimension_numbers<[1], [0], [0], [1], [0, 0, 1, 1], [], []>} : vector<8x128xf32>, vector<128x32xf32>, vector<8x32xf32> -> vector<8x32xf32>
    %163 = arith.addf %118, %162 : vector<8x32xf32>
    %c0_75 = arith.constant 0 : index
    %c0_76 = arith.constant 0 : index
    %c0_77 = arith.constant 0 : index
    %164 = vector.load %arg15[%c0_75, %c0_76, %c0_77] : memref<2x1x32xf32, #tpu.memory_space<vmem>>, vector<1x1x32xf32>
    %165 = vector.shape_cast %164 : vector<1x1x32xf32> to vector<1x32xf32>
    %166 = vector.broadcast %165 : vector<1x32xf32> to vector<8x32xf32>
    %167 = arith.addf %163, %166 : vector<8x32xf32>
    %c1 = arith.constant 1 : index
    %c0_78 = arith.constant 0 : index
    %c0_79 = arith.constant 0 : index
    %168 = vector.load %arg4[%c1, %c0_78, %c0_79] : memref<2x1x32xf32, #tpu.memory_space<vmem>>, vector<1x1x32xf32>
    %169 = vector.shape_cast %168 : vector<1x1x32xf32> to vector<1x32xf32>
    %c1_80 = arith.constant 1 : index
    %c0_81 = arith.constant 0 : index
    %c0_82 = arith.constant 0 : index
    %170 = vector.load %arg5[%c1_80, %c0_81, %c0_82] : memref<2x1x32xf32, #tpu.memory_space<vmem>>, vector<1x1x32xf32>
    %171 = vector.shape_cast %170 : vector<1x1x32xf32> to vector<1x32xf32>
    %cst_83 = arith.constant dense<0.000000e+00> : vector<8xf32>
    %172 = vector.multi_reduction <add>, %167, %cst_83 [1] : vector<8x32xf32> to vector<8xf32>
    %173 = vector.shape_cast %172 : vector<8xf32> to vector<8x1xf32>
    %cst_84 = arith.constant 3.200000e+01 : f32
    %174 = vector.broadcast %cst_84 : f32 to vector<8x1xf32>
    %175 = arith.divf %173, %174 : vector<8x1xf32>
    %176 = vector.broadcast %175 : vector<8x1xf32> to vector<8x32xf32>
    %177 = arith.subf %167, %176 : vector<8x32xf32>
    %178 = arith.mulf %177, %177 : vector<8x32xf32>
    %cst_85 = arith.constant dense<0.000000e+00> : vector<8xf32>
    %179 = vector.multi_reduction <add>, %178, %cst_85 [1] : vector<8x32xf32> to vector<8xf32>
    %180 = vector.shape_cast %179 : vector<8xf32> to vector<8x1xf32>
    %cst_86 = arith.constant 3.200000e+01 : f32
    %181 = vector.broadcast %cst_86 : f32 to vector<8x1xf32>
    %182 = arith.divf %180, %181 : vector<8x1xf32>
    %183 = vector.broadcast %175 : vector<8x1xf32> to vector<8x32xf32>
    %184 = arith.subf %167, %183 : vector<8x32xf32>
    %cst_87 = arith.constant 9.99999997E-7 : f32
    %185 = vector.broadcast %cst_87 : f32 to vector<8x1xf32>
    %186 = arith.addf %182, %185 : vector<8x1xf32>
    %187 = math.rsqrt %186 : vector<8x1xf32>
    %188 = vector.broadcast %187 : vector<8x1xf32> to vector<8x32xf32>
    %189 = arith.mulf %184, %188 : vector<8x32xf32>
    %190 = vector.broadcast %169 : vector<1x32xf32> to vector<8x32xf32>
    %191 = arith.mulf %189, %190 : vector<8x32xf32>
    %192 = vector.broadcast %171 : vector<1x32xf32> to vector<8x32xf32>
    %193 = arith.addf %191, %192 : vector<8x32xf32>
    %c1_88 = arith.constant 1 : index
    %c0_89 = arith.constant 0 : index
    %c0_90 = arith.constant 0 : index
    %194 = vector.load %arg6[%c1_88, %c0_89, %c0_90] : memref<2x32x96xf32, #tpu.memory_space<vmem>>, vector<1x32x96xf32>
    %195 = vector.shape_cast %194 : vector<1x32x96xf32> to vector<32x96xf32>
    %cst_91 = arith.constant dense<0.000000e+00> : vector<8x96xf32>
    %196 = tpu.matmul %193, %195, %cst_91 {dimension_numbers = #tpu.dot_dimension_numbers<[1], [0], [0], [1], [0, 0, 1, 1], [], []>} : vector<8x32xf32>, vector<32x96xf32>, vector<8x96xf32> -> vector<8x96xf32>
    %c1_92 = arith.constant 1 : index
    %c0_93 = arith.constant 0 : index
    %c0_94 = arith.constant 0 : index
    %197 = vector.load %arg7[%c1_92, %c0_93, %c0_94] : memref<2x1x96xf32, #tpu.memory_space<vmem>>, vector<1x1x96xf32>
    %198 = vector.shape_cast %197 : vector<1x1x96xf32> to vector<1x96xf32>
    %199 = vector.broadcast %198 : vector<1x96xf32> to vector<8x96xf32>
    %200 = arith.addf %196, %199 : vector<8x96xf32>
    %201 = vector.extract_strided_slice %200 {offsets = [0, 0], sizes = [8, 8], strides = [1, 1]} : vector<8x96xf32> to vector<8x8xf32>
    %202 = vector.extract_strided_slice %200 {offsets = [0, 32], sizes = [8, 8], strides = [1, 1]} : vector<8x96xf32> to vector<8x8xf32>
    %203 = vector.extract_strided_slice %200 {offsets = [0, 64], sizes = [8, 8], strides = [1, 1]} : vector<8x96xf32> to vector<8x8xf32>
    %cst_95 = arith.constant dense<0.000000e+00> : vector<8x8xf32>
    %204 = tpu.matmul %201, %202, %cst_95 {dimension_numbers = #tpu.dot_dimension_numbers<[1], [1], [0], [0], [0, 0, 1, 0], [], []>} : vector<8x8xf32>, vector<8x8xf32>, vector<8x8xf32> -> vector<8x8xf32>
    %205 = arith.addf %204, %12 : vector<8x8xf32>
    %cst_96 = arith.constant dense<0xFF800000> : vector<8xf32>
    %206 = vector.multi_reduction <maximumf>, %205, %cst_96 [1] : vector<8x8xf32> to vector<8xf32>
    %207 = vector.shape_cast %206 : vector<8xf32> to vector<8x1xf32>
    %208 = vector.broadcast %207 : vector<8x1xf32> to vector<8x8xf32>
    %209 = arith.subf %205, %208 : vector<8x8xf32>
    %210 = math.exp %209 : vector<8x8xf32>
    %cst_97 = arith.constant dense<0.000000e+00> : vector<8xf32>
    %211 = vector.multi_reduction <add>, %210, %cst_97 [1] : vector<8x8xf32> to vector<8xf32>
    %212 = vector.shape_cast %211 : vector<8xf32> to vector<8x1xf32>
    %213 = tpu.reciprocal %212 {approx = true} : vector<8x1xf32> -> vector<8x1xf32>
    %214 = vector.broadcast %213 : vector<8x1xf32> to vector<8x8xf32>
    %215 = arith.mulf %210, %214 : vector<8x8xf32>
    %cst_98 = arith.constant dense<0.000000e+00> : vector<8x8xf32>
    %216 = tpu.matmul %215, %203, %cst_98 {dimension_numbers = #tpu.dot_dimension_numbers<[1], [0], [0], [1], [0, 0, 1, 1], [], []>} : vector<8x8xf32>, vector<8x8xf32>, vector<8x8xf32> -> vector<8x8xf32>
    %217 = vector.extract_strided_slice %200 {offsets = [0, 8], sizes = [8, 8], strides = [1, 1]} : vector<8x96xf32> to vector<8x8xf32>
    %218 = vector.extract_strided_slice %200 {offsets = [0, 40], sizes = [8, 8], strides = [1, 1]} : vector<8x96xf32> to vector<8x8xf32>
    %219 = vector.extract_strided_slice %200 {offsets = [0, 72], sizes = [8, 8], strides = [1, 1]} : vector<8x96xf32> to vector<8x8xf32>
    %cst_99 = arith.constant dense<0.000000e+00> : vector<8x8xf32>
    %220 = tpu.matmul %217, %218, %cst_99 {dimension_numbers = #tpu.dot_dimension_numbers<[1], [1], [0], [0], [0, 0, 1, 0], [], []>} : vector<8x8xf32>, vector<8x8xf32>, vector<8x8xf32> -> vector<8x8xf32>
    %221 = arith.addf %220, %12 : vector<8x8xf32>
    %cst_100 = arith.constant dense<0xFF800000> : vector<8xf32>
    %222 = vector.multi_reduction <maximumf>, %221, %cst_100 [1] : vector<8x8xf32> to vector<8xf32>
    %223 = vector.shape_cast %222 : vector<8xf32> to vector<8x1xf32>
    %224 = vector.broadcast %223 : vector<8x1xf32> to vector<8x8xf32>
    %225 = arith.subf %221, %224 : vector<8x8xf32>
    %226 = math.exp %225 : vector<8x8xf32>
    %cst_101 = arith.constant dense<0.000000e+00> : vector<8xf32>
    %227 = vector.multi_reduction <add>, %226, %cst_101 [1] : vector<8x8xf32> to vector<8xf32>
    %228 = vector.shape_cast %227 : vector<8xf32> to vector<8x1xf32>
    %229 = tpu.reciprocal %228 {approx = true} : vector<8x1xf32> -> vector<8x1xf32>
    %230 = vector.broadcast %229 : vector<8x1xf32> to vector<8x8xf32>
    %231 = arith.mulf %226, %230 : vector<8x8xf32>
    %cst_102 = arith.constant dense<0.000000e+00> : vector<8x8xf32>
    %232 = tpu.matmul %231, %219, %cst_102 {dimension_numbers = #tpu.dot_dimension_numbers<[1], [0], [0], [1], [0, 0, 1, 1], [], []>} : vector<8x8xf32>, vector<8x8xf32>, vector<8x8xf32> -> vector<8x8xf32>
    %233 = vector.extract_strided_slice %200 {offsets = [0, 16], sizes = [8, 8], strides = [1, 1]} : vector<8x96xf32> to vector<8x8xf32>
    %234 = vector.extract_strided_slice %200 {offsets = [0, 48], sizes = [8, 8], strides = [1, 1]} : vector<8x96xf32> to vector<8x8xf32>
    %235 = vector.extract_strided_slice %200 {offsets = [0, 80], sizes = [8, 8], strides = [1, 1]} : vector<8x96xf32> to vector<8x8xf32>
    %cst_103 = arith.constant dense<0.000000e+00> : vector<8x8xf32>
    %236 = tpu.matmul %233, %234, %cst_103 {dimension_numbers = #tpu.dot_dimension_numbers<[1], [1], [0], [0], [0, 0, 1, 0], [], []>} : vector<8x8xf32>, vector<8x8xf32>, vector<8x8xf32> -> vector<8x8xf32>
    %237 = arith.addf %236, %12 : vector<8x8xf32>
    %cst_104 = arith.constant dense<0xFF800000> : vector<8xf32>
    %238 = vector.multi_reduction <maximumf>, %237, %cst_104 [1] : vector<8x8xf32> to vector<8xf32>
    %239 = vector.shape_cast %238 : vector<8xf32> to vector<8x1xf32>
    %240 = vector.broadcast %239 : vector<8x1xf32> to vector<8x8xf32>
    %241 = arith.subf %237, %240 : vector<8x8xf32>
    %242 = math.exp %241 : vector<8x8xf32>
    %cst_105 = arith.constant dense<0.000000e+00> : vector<8xf32>
    %243 = vector.multi_reduction <add>, %242, %cst_105 [1] : vector<8x8xf32> to vector<8xf32>
    %244 = vector.shape_cast %243 : vector<8xf32> to vector<8x1xf32>
    %245 = tpu.reciprocal %244 {approx = true} : vector<8x1xf32> -> vector<8x1xf32>
    %246 = vector.broadcast %245 : vector<8x1xf32> to vector<8x8xf32>
    %247 = arith.mulf %242, %246 : vector<8x8xf32>
    %cst_106 = arith.constant dense<0.000000e+00> : vector<8x8xf32>
    %248 = tpu.matmul %247, %235, %cst_106 {dimension_numbers = #tpu.dot_dimension_numbers<[1], [0], [0], [1], [0, 0, 1, 1], [], []>} : vector<8x8xf32>, vector<8x8xf32>, vector<8x8xf32> -> vector<8x8xf32>
    %249 = vector.extract_strided_slice %200 {offsets = [0, 24], sizes = [8, 8], strides = [1, 1]} : vector<8x96xf32> to vector<8x8xf32>
    %250 = vector.extract_strided_slice %200 {offsets = [0, 56], sizes = [8, 8], strides = [1, 1]} : vector<8x96xf32> to vector<8x8xf32>
    %251 = vector.extract_strided_slice %200 {offsets = [0, 88], sizes = [8, 8], strides = [1, 1]} : vector<8x96xf32> to vector<8x8xf32>
    %cst_107 = arith.constant dense<0.000000e+00> : vector<8x8xf32>
    %252 = tpu.matmul %249, %250, %cst_107 {dimension_numbers = #tpu.dot_dimension_numbers<[1], [1], [0], [0], [0, 0, 1, 0], [], []>} : vector<8x8xf32>, vector<8x8xf32>, vector<8x8xf32> -> vector<8x8xf32>
    %253 = arith.addf %252, %12 : vector<8x8xf32>
    %cst_108 = arith.constant dense<0xFF800000> : vector<8xf32>
    %254 = vector.multi_reduction <maximumf>, %253, %cst_108 [1] : vector<8x8xf32> to vector<8xf32>
    %255 = vector.shape_cast %254 : vector<8xf32> to vector<8x1xf32>
    %256 = vector.broadcast %255 : vector<8x1xf32> to vector<8x8xf32>
    %257 = arith.subf %253, %256 : vector<8x8xf32>
    %258 = math.exp %257 : vector<8x8xf32>
    %cst_109 = arith.constant dense<0.000000e+00> : vector<8xf32>
    %259 = vector.multi_reduction <add>, %258, %cst_109 [1] : vector<8x8xf32> to vector<8xf32>
    %260 = vector.shape_cast %259 : vector<8xf32> to vector<8x1xf32>
    %261 = tpu.reciprocal %260 {approx = true} : vector<8x1xf32> -> vector<8x1xf32>
    %262 = vector.broadcast %261 : vector<8x1xf32> to vector<8x8xf32>
    %263 = arith.mulf %258, %262 : vector<8x8xf32>
    %cst_110 = arith.constant dense<0.000000e+00> : vector<8x8xf32>
    %264 = tpu.matmul %263, %251, %cst_110 {dimension_numbers = #tpu.dot_dimension_numbers<[1], [0], [0], [1], [0, 0, 1, 1], [], []>} : vector<8x8xf32>, vector<8x8xf32>, vector<8x8xf32> -> vector<8x8xf32>
    %265 = tpu.concatenate %216, %232, %248, %264 in 1 : vector<8x8xf32>, vector<8x8xf32>, vector<8x8xf32>, vector<8x8xf32> -> vector<8x32xf32>
    %c1_111 = arith.constant 1 : index
    %c0_112 = arith.constant 0 : index
    %c0_113 = arith.constant 0 : index
    %266 = vector.load %arg8[%c1_111, %c0_112, %c0_113] : memref<2x32x32xf32, #tpu.memory_space<vmem>>, vector<1x32x32xf32>
    %267 = vector.shape_cast %266 : vector<1x32x32xf32> to vector<32x32xf32>
    %cst_114 = arith.constant dense<0.000000e+00> : vector<8x32xf32>
    %268 = tpu.matmul %265, %267, %cst_114 {dimension_numbers = #tpu.dot_dimension_numbers<[1], [0], [0], [1], [0, 0, 1, 1], [], []>} : vector<8x32xf32>, vector<32x32xf32>, vector<8x32xf32> -> vector<8x32xf32>
    %269 = arith.addf %167, %268 : vector<8x32xf32>
    %c1_115 = arith.constant 1 : index
    %c0_116 = arith.constant 0 : index
    %c0_117 = arith.constant 0 : index
    %270 = vector.load %arg9[%c1_115, %c0_116, %c0_117] : memref<2x1x32xf32, #tpu.memory_space<vmem>>, vector<1x1x32xf32>
    %271 = vector.shape_cast %270 : vector<1x1x32xf32> to vector<1x32xf32>
    %272 = vector.broadcast %271 : vector<1x32xf32> to vector<8x32xf32>
    %273 = arith.addf %269, %272 : vector<8x32xf32>
    %c1_118 = arith.constant 1 : index
    %c0_119 = arith.constant 0 : index
    %c0_120 = arith.constant 0 : index
    %274 = vector.load %arg10[%c1_118, %c0_119, %c0_120] : memref<2x1x32xf32, #tpu.memory_space<vmem>>, vector<1x1x32xf32>
    %275 = vector.shape_cast %274 : vector<1x1x32xf32> to vector<1x32xf32>
    %c1_121 = arith.constant 1 : index
    %c0_122 = arith.constant 0 : index
    %c0_123 = arith.constant 0 : index
    %276 = vector.load %arg11[%c1_121, %c0_122, %c0_123] : memref<2x1x32xf32, #tpu.memory_space<vmem>>, vector<1x1x32xf32>
    %277 = vector.shape_cast %276 : vector<1x1x32xf32> to vector<1x32xf32>
    %cst_124 = arith.constant dense<0.000000e+00> : vector<8xf32>
    %278 = vector.multi_reduction <add>, %273, %cst_124 [1] : vector<8x32xf32> to vector<8xf32>
    %279 = vector.shape_cast %278 : vector<8xf32> to vector<8x1xf32>
    %cst_125 = arith.constant 3.200000e+01 : f32
    %280 = vector.broadcast %cst_125 : f32 to vector<8x1xf32>
    %281 = arith.divf %279, %280 : vector<8x1xf32>
    %282 = vector.broadcast %281 : vector<8x1xf32> to vector<8x32xf32>
    %283 = arith.subf %273, %282 : vector<8x32xf32>
    %284 = arith.mulf %283, %283 : vector<8x32xf32>
    %cst_126 = arith.constant dense<0.000000e+00> : vector<8xf32>
    %285 = vector.multi_reduction <add>, %284, %cst_126 [1] : vector<8x32xf32> to vector<8xf32>
    %286 = vector.shape_cast %285 : vector<8xf32> to vector<8x1xf32>
    %cst_127 = arith.constant 3.200000e+01 : f32
    %287 = vector.broadcast %cst_127 : f32 to vector<8x1xf32>
    %288 = arith.divf %286, %287 : vector<8x1xf32>
    %289 = vector.broadcast %281 : vector<8x1xf32> to vector<8x32xf32>
    %290 = arith.subf %273, %289 : vector<8x32xf32>
    %cst_128 = arith.constant 9.99999997E-7 : f32
    %291 = vector.broadcast %cst_128 : f32 to vector<8x1xf32>
    %292 = arith.addf %288, %291 : vector<8x1xf32>
    %293 = math.rsqrt %292 : vector<8x1xf32>
    %294 = vector.broadcast %293 : vector<8x1xf32> to vector<8x32xf32>
    %295 = arith.mulf %290, %294 : vector<8x32xf32>
    %296 = vector.broadcast %275 : vector<1x32xf32> to vector<8x32xf32>
    %297 = arith.mulf %295, %296 : vector<8x32xf32>
    %298 = vector.broadcast %277 : vector<1x32xf32> to vector<8x32xf32>
    %299 = arith.addf %297, %298 : vector<8x32xf32>
    %c1_129 = arith.constant 1 : index
    %c0_130 = arith.constant 0 : index
    %c0_131 = arith.constant 0 : index
    %300 = vector.load %arg12[%c1_129, %c0_130, %c0_131] : memref<2x32x128xf32, #tpu.memory_space<vmem>>, vector<1x32x128xf32>
    %301 = vector.shape_cast %300 : vector<1x32x128xf32> to vector<32x128xf32>
    %cst_132 = arith.constant dense<0.000000e+00> : vector<8x128xf32>
    %302 = tpu.matmul %299, %301, %cst_132 {dimension_numbers = #tpu.dot_dimension_numbers<[1], [0], [0], [1], [0, 0, 1, 1], [], []>} : vector<8x32xf32>, vector<32x128xf32>, vector<8x128xf32> -> vector<8x128xf32>
    %c1_133 = arith.constant 1 : index
    %c0_134 = arith.constant 0 : index
    %c0_135 = arith.constant 0 : index
    %303 = vector.load %arg13[%c1_133, %c0_134, %c0_135] : memref<2x1x128xf32, #tpu.memory_space<vmem>>, vector<1x1x128xf32>
    %304 = vector.shape_cast %303 : vector<1x1x128xf32> to vector<1x128xf32>
    %305 = vector.broadcast %304 : vector<1x128xf32> to vector<8x128xf32>
    %306 = arith.addf %302, %305 : vector<8x128xf32>
    %cst_136 = arith.constant 5.000000e-01 : f32
    %307 = vector.broadcast %cst_136 : f32 to vector<8x128xf32>
    %308 = arith.mulf %307, %306 : vector<8x128xf32>
    %cst_137 = arith.constant 0.707106769 : f32
    %309 = vector.broadcast %cst_137 : f32 to vector<8x128xf32>
    %310 = arith.mulf %306, %309 : vector<8x128xf32>
    %311 = math.erf %310 : vector<8x128xf32>
    %cst_138 = arith.constant 1.000000e+00 : f32
    %312 = vector.broadcast %cst_138 : f32 to vector<8x128xf32>
    %313 = arith.addf %312, %311 : vector<8x128xf32>
    %314 = arith.mulf %308, %313 : vector<8x128xf32>
    %c1_139 = arith.constant 1 : index
    %c0_140 = arith.constant 0 : index
    %c0_141 = arith.constant 0 : index
    %315 = vector.load %arg14[%c1_139, %c0_140, %c0_141] : memref<2x128x32xf32, #tpu.memory_space<vmem>>, vector<1x128x32xf32>
    %316 = vector.shape_cast %315 : vector<1x128x32xf32> to vector<128x32xf32>
    %cst_142 = arith.constant dense<0.000000e+00> : vector<8x32xf32>
    %317 = tpu.matmul %314, %316, %cst_142 {dimension_numbers = #tpu.dot_dimension_numbers<[1], [0], [0], [1], [0, 0, 1, 1], [], []>} : vector<8x128xf32>, vector<128x32xf32>, vector<8x32xf32> -> vector<8x32xf32>
    %318 = arith.addf %273, %317 : vector<8x32xf32>
    %c1_143 = arith.constant 1 : index
    %c0_144 = arith.constant 0 : index
    %c0_145 = arith.constant 0 : index
    %319 = vector.load %arg15[%c1_143, %c0_144, %c0_145] : memref<2x1x32xf32, #tpu.memory_space<vmem>>, vector<1x1x32xf32>
    %320 = vector.shape_cast %319 : vector<1x1x32xf32> to vector<1x32xf32>
    %321 = vector.broadcast %320 : vector<1x32xf32> to vector<8x32xf32>
    %322 = arith.addf %318, %321 : vector<8x32xf32>
    %c0_146 = arith.constant 0 : index
    %c0_147 = arith.constant 0 : index
    %323 = vector.load %arg16[%c0_146, %c0_147] : memref<1x32xf32, #tpu.memory_space<vmem>>, vector<1x32xf32>
    %c0_148 = arith.constant 0 : index
    %c0_149 = arith.constant 0 : index
    %324 = vector.load %arg17[%c0_148, %c0_149] : memref<1x32xf32, #tpu.memory_space<vmem>>, vector<1x32xf32>
    %cst_150 = arith.constant dense<0.000000e+00> : vector<8xf32>
    %325 = vector.multi_reduction <add>, %322, %cst_150 [1] : vector<8x32xf32> to vector<8xf32>
    %326 = vector.shape_cast %325 : vector<8xf32> to vector<8x1xf32>
    %cst_151 = arith.constant 3.200000e+01 : f32
    %327 = vector.broadcast %cst_151 : f32 to vector<8x1xf32>
    %328 = arith.divf %326, %327 : vector<8x1xf32>
    %329 = vector.broadcast %328 : vector<8x1xf32> to vector<8x32xf32>
    %330 = arith.subf %322, %329 : vector<8x32xf32>
    %331 = arith.mulf %330, %330 : vector<8x32xf32>
    %cst_152 = arith.constant dense<0.000000e+00> : vector<8xf32>
    %332 = vector.multi_reduction <add>, %331, %cst_152 [1] : vector<8x32xf32> to vector<8xf32>
    %333 = vector.shape_cast %332 : vector<8xf32> to vector<8x1xf32>
    %cst_153 = arith.constant 3.200000e+01 : f32
    %334 = vector.broadcast %cst_153 : f32 to vector<8x1xf32>
    %335 = arith.divf %333, %334 : vector<8x1xf32>
    %336 = vector.broadcast %328 : vector<8x1xf32> to vector<8x32xf32>
    %337 = arith.subf %322, %336 : vector<8x32xf32>
    %cst_154 = arith.constant 9.99999997E-7 : f32
    %338 = vector.broadcast %cst_154 : f32 to vector<8x1xf32>
    %339 = arith.addf %335, %338 : vector<8x1xf32>
    %340 = math.rsqrt %339 : vector<8x1xf32>
    %341 = vector.broadcast %340 : vector<8x1xf32> to vector<8x32xf32>
    %342 = arith.mulf %337, %341 : vector<8x32xf32>
    %343 = vector.broadcast %323 : vector<1x32xf32> to vector<8x32xf32>
    %344 = arith.mulf %342, %343 : vector<8x32xf32>
    %345 = vector.broadcast %324 : vector<1x32xf32> to vector<8x32xf32>
    %346 = arith.addf %344, %345 : vector<8x32xf32>
    %c0_155 = arith.constant 0 : index
    %c0_156 = arith.constant 0 : index
    %c0_157 = arith.constant 0 : index
    %347 = vector.load %arg18[%c0_155, %c0_156, %c0_157] : memref<1x8x32xf32, #tpu.memory_space<vmem>>, vector<1x8x32xf32>
    %348 = vector.shape_cast %347 : vector<1x8x32xf32> to vector<8x32xf32>
    %349 = vector.shape_cast %346 : vector<8x32xf32> to vector<1x8x32xf32>
    tpu.vector_store %arg18[%c0_155, %c0_156, %c0_157], %349 {strides = array<i32>} : memref<1x8x32xf32, #tpu.memory_space<vmem>>, vector<1x8x32xf32>,
    return
  }
  func.func @transform_0(%arg0: i32) -> (i32, i32, i32) {
    %c0_i32 = arith.constant 0 : i32
    %c0_i32_0 = arith.constant 0 : i32
    %c0_i32_1 = arith.constant 0 : i32
    return %arg0, %c0_i32, %c0_i32_0 : i32, i32, i32
  }
  func.func @transform_1(%arg0: i32) -> (i32, i32) {
    %c0_i32 = arith.constant 0 : i32
    %c0_i32_0 = arith.constant 0 : i32
    %c0_i32_1 = arith.constant 0 : i32
    return %c0_i32, %c0_i32_0 : i32, i32
  }
  func.func @transform_2(%arg0: i32) -> (i32, i32, i32) {
    %c0_i32 = arith.constant 0 : i32
    %c0_i32_0 = arith.constant 0 : i32
    %c0_i32_1 = arith.constant 0 : i32
    return %arg0, %c0_i32, %c0_i32_0 : i32, i32, i32
  }
  func.func @transform_3(%arg0: i32) -> (i32, i32, i32) {
    %c0_i32 = arith.constant 0 : i32
    %c0_i32_0 = arith.constant 0 : i32
    %c0_i32_1 = arith.constant 0 : i32
    %c0_i32_2 = arith.constant 0 : i32
    return %c0_i32, %c0_i32_0, %c0_i32_1 : i32, i32, i32
  }
  func.func @transform_4(%arg0: i32) -> (i32, i32, i32) {
    %c0_i32 = arith.constant 0 : i32
    %c0_i32_0 = arith.constant 0 : i32
    %c0_i32_1 = arith.constant 0 : i32
    %c0_i32_2 = arith.constant 0 : i32
    return %c0_i32, %c0_i32_0, %c0_i32_1 : i32, i32, i32
  }
  func.func @transform_5(%arg0: i32) -> (i32, i32, i32) {
    %c0_i32 = arith.constant 0 : i32
    %c0_i32_0 = arith.constant 0 : i32
    %c0_i32_1 = arith.constant 0 : i32
    %c0_i32_2 = arith.constant 0 : i32
    return %c0_i32, %c0_i32_0, %c0_i32_1 : i32, i32, i32
  }
  func.func @transform_6(%arg0: i32) -> (i32, i32, i32) {
    %c0_i32 = arith.constant 0 : i32
    %c0_i32_0 = arith.constant 0 : i32
    %c0_i32_1 = arith.constant 0 : i32
    %c0_i32_2 = arith.constant 0 : i32
    return %c0_i32, %c0_i32_0, %c0_i32_1 : i32, i32, i32
  }
  func.func @transform_7(%arg0: i32) -> (i32, i32, i32) {
    %c0_i32 = arith.constant 0 : i32
    %c0_i32_0 = arith.constant 0 : i32
    %c0_i32_1 = arith.constant 0 : i32
    %c0_i32_2 = arith.constant 0 : i32
    return %c0_i32, %c0_i32_0, %c0_i32_1 : i32, i32, i32
  }
  func.func @transform_8(%arg0: i32) -> (i32, i32, i32) {
    %c0_i32 = arith.constant 0 : i32
    %c0_i32_0 = arith.constant 0 : i32
    %c0_i32_1 = arith.constant 0 : i32
    %c0_i32_2 = arith.constant 0 : i32
    return %c0_i32, %c0_i32_0, %c0_i32_1 : i32, i32, i32
  }
  func.func @transform_9(%arg0: i32) -> (i32, i32, i32) {
    %c0_i32 = arith.constant 0 : i32
    %c0_i32_0 = arith.constant 0 : i32
    %c0_i32_1 = arith.constant 0 : i32
    %c0_i32_2 = arith.constant 0 : i32
    return %c0_i32, %c0_i32_0, %c0_i32_1 : i32, i32, i32
  }
  func.func @transform_10(%arg0: i32) -> (i32, i32, i32) {
    %c0_i32 = arith.constant 0 : i32
    %c0_i32_0 = arith.constant 0 : i32
    %c0_i32_1 = arith.constant 0 : i32
    %c0_i32_2 = arith.constant 0 : i32
    return %c0_i32, %c0_i32_0, %c0_i32_1 : i32, i32, i32
  }
  func.func @transform_11(%arg0: i32) -> (i32, i32, i32) {
    %c0_i32 = arith.constant 0 : i32
    %c0_i32_0 = arith.constant 0 : i32
    %c0_i32_1 = arith.constant 0 : i32
    %c0_i32_2 = arith.constant 0 : i32
    return %c0_i32, %c0_i32_0, %c0_i32_1 : i32, i32, i32
  }
  func.func @transform_12(%arg0: i32) -> (i32, i32, i32) {
    %c0_i32 = arith.constant 0 : i32
    %c0_i32_0 = arith.constant 0 : i32
    %c0_i32_1 = arith.constant 0 : i32
    %c0_i32_2 = arith.constant 0 : i32
    return %c0_i32, %c0_i32_0, %c0_i32_1 : i32, i32, i32
  }
  func.func @transform_13(%arg0: i32) -> (i32, i32, i32) {
    %c0_i32 = arith.constant 0 : i32
    %c0_i32_0 = arith.constant 0 : i32
    %c0_i32_1 = arith.constant 0 : i32
    %c0_i32_2 = arith.constant 0 : i32
    return %c0_i32, %c0_i32_0, %c0_i32_1 : i32, i32, i32
  }
  func.func @transform_14(%arg0: i32) -> (i32, i32, i32) {
    %c0_i32 = arith.constant 0 : i32
    %c0_i32_0 = arith.constant 0 : i32
    %c0_i32_1 = arith.constant 0 : i32
    %c0_i32_2 = arith.constant 0 : i32
    return %c0_i32, %c0_i32_0, %c0_i32_1 : i32, i32, i32
  }
  func.func @transform_15(%arg0: i32) -> (i32, i32) {
    %c0_i32 = arith.constant 0 : i32
    %c0_i32_0 = arith.constant 0 : i32
    %c0_i32_1 = arith.constant 0 : i32
    return %c0_i32, %c0_i32_0 : i32, i32
  }
  func.func @transform_16(%arg0: i32) -> (i32, i32) {
    %c0_i32 = arith.constant 0 : i32
    %c0_i32_0 = arith.constant 0 : i32
    %c0_i32_1 = arith.constant 0 : i32
    return %c0_i32, %c0_i32_0 : i32, i32
  }
  func.func @transform_17(%arg0: i32) -> (i32, i32, i32) {
    %c0_i32 = arith.constant 0 : i32
    %c0_i32_0 = arith.constant 0 : i32
    %c0_i32_1 = arith.constant 0 : i32
    return %arg0, %c0_i32, %c0_i32_0 : i32, i32, i32
  }
}

</mosaic_0001>

<llo_original>
// kernel: squeeze.3
$region0: #{squeeze.3}
  %s0 = inlined_call_operand.vmem [shape: f32[1,2,2,2], index: 0, kind: input, shape index: {}]
  %s1 = inlined_call_operand.vmem [shape: f32[8], index: 1, kind: output, shape index: {}]
  $region1: #{squeeze.3} parent=0
    #allocation0 [shape = 'u8[4096]{0}', space=vmem, size = 0x1000, scoped, tag = 'scoped mem for output reshape']
    #allocation1 [shape = 'u8[8192]{0}', space=vmem, size = 0x2000, scoped, tag = 'scoped mem for input reshape']
    %s3 = ssub.s32 4, 1
    %s4 = scalar_lea.vmem %s0, 2
    %v5 = vld [vmem:[%s4] sm:%s3]
    %s6 = scalar_lea.vmem [#allocation1], 8
    %7 = vst [vmem:[%s6] sm:%s3] %v5
    %v8 = vld [vmem:[%s0] sm:%s3]
    %9 = vst [vmem:[#allocation1] sm:%s3] %v8
    %v10 = vld [vmem:[#allocation1] sm:$0x1]
    %vm11 = vcmask 15360
    %12 = vst.msk [vmem:[#allocation0] sm:$0x1] %vm11, %v10
    %s13 = scalar_lea.vmem [#allocation1], 9
    %v14 = vld [vmem:[%s13] sm:$0x1]
    %15 = vrot.lane.b32.xlu0 %v14, 6
    %v16 = vpop.permute.xlu0 %15
    %vm17 = vcmask 64560
    %18 = vst.msk [vmem:[#allocation0] sm:$0x1] %vm17, %v16
    %s19 = scalar_lea.vmem [#allocation1], 8
    %v20 = vld [vmem:[%s19] sm:$0x1]
    %21 = vrot.lane.b32.xlu0 %v20, 4
    %v22 = vpop.permute.xlu0 %21
    %vm23 = vcmask 48160
    %24 = vst.msk [vmem:[#allocation0] sm:$0x1] %vm23, %v22
    %s25 = scalar_lea.vmem [#allocation1], 1
    %v26 = vld [vmem:[%s25] sm:$0x1]
    %27 = vrot.lane.b32.xlu0 %v26, 2
    %v28 = vpop.permute.xlu0 %27
    %vm29 = vcmask 31760
    %30 = vst.msk [vmem:[#allocation0] sm:$0x1] %vm29, %v28
    %s32 = ssub.s32 2, 1
    %v33 = vld [vmem:[#allocation0] sm:%s32]
    %s35 = ssub.s32 2, 1
    %36 = vst [vmem:[%s1] sm:%s35] %v33

// kernel: scalemae_forward.1
$region0: #{scalemae_forward.1}
  #allocation0 [shape = 'u32[]', space=smem, size = 0x4, offset = 0x4, fixed_abs, tag = 'smem constant byte address 0x4 - core index']
  #allocation1 [shape = 'u32[72,128]{1,0:T(1,128)}', space=vmem, size = 0x9000, scoped, tag = 'internal scratch']
  %s0 = inlined_call_operand.vmem [shape: f32[2,8,192], index: 0, kind: input, shape index: {}]
  %s1 = inlined_call_operand.vmem [shape: f32[192,32], index: 1, kind: input, shape index: {}]
  %s2 = inlined_call_operand.vmem [shape: f32[2,8,32], index: 2, kind: input, shape index: {}]
  %s3 = inlined_call_operand.vmem [shape: f32[2,1,32], index: 3, kind: input, shape index: {}]
  %s4 = inlined_call_operand.vmem [shape: f32[2,1,32], index: 4, kind: input, shape index: {}]
  %s5 = inlined_call_operand.vmem [shape: f32[2,32,96], index: 5, kind: input, shape index: {}]
  %s6 = inlined_call_operand.vmem [shape: f32[2,1,96], index: 6, kind: input, shape index: {}]
  %s7 = inlined_call_operand.vmem [shape: f32[2,32,32], index: 7, kind: input, shape index: {}]
  %s8 = inlined_call_operand.vmem [shape: f32[2,1,32], index: 8, kind: input, shape index: {}]
  %s9 = inlined_call_operand.vmem [shape: f32[2,1,32], index: 9, kind: input, shape index: {}]
  %s10 = inlined_call_operand.vmem [shape: f32[2,1,32], index: 10, kind: input, shape index: {}]
  %s11 = inlined_call_operand.vmem [shape: f32[2,32,128], index: 11, kind: input, shape index: {}]
  %s12 = inlined_call_operand.vmem [shape: f32[2,1,128], index: 12, kind: input, shape index: {}]
  %s13 = inlined_call_operand.vmem [shape: f32[2,128,32], index: 13, kind: input, shape index: {}]
  %s14 = inlined_call_operand.vmem [shape: f32[2,1,32], index: 14, kind: input, shape index: {}]
  %s15 = inlined_call_operand.vmem [shape: f32[1,32], index: 15, kind: input, shape index: {}]
  %s16 = inlined_call_operand.vmem [shape: f32[1,32], index: 16, kind: input, shape index: {}]
  %s17 = inlined_call_operand.vmem [shape: f32[2,8,32], index: 17, kind: output, shape index: {}]
  %s18 = sld [smem:[#allocation0]]
  $region101: #{scalemae_forward.1} parent=0
    _
  %s20 = ssub.s32 1, %s18
  %s21 = scalar_select 0, %s20, %s18
  loop: start=0, step=1, limit=4
  $region2: #{scalemae_forward.1} parent=0 // loop_pre_header
    _
  $region3: #{scalemae_forward.1} parent=0 // loop_header
    %s23 = sphi 0, %s27
    %p24 = scmp.ge.s32.totalorder %s23, 4
    %s33 = sphi 0, %s35
    %s36 = sphi 0, %s33
    %s37 = sphi 0, %s36
    %s53 = sphi 0, %s37
    %s57 = sphi 0, %s57
    %s59 = sphi 0, %s57
    %s60 = sphi 0, %s59
    %s74 = sphi 0, %s60
    %s80 = sphi 0, %s82
    %s83 = sphi 0, %s80
    %s84 = sphi 0, %s83
    %s100 = sphi 0, %s84
    %s104 = sphi 0, %s104
    %s106 = sphi 0, %s104
    %s107 = sphi 0, %s106
    %s121 = sphi 0, %s107
    %s125 = sphi 0, %s125
    %s127 = sphi 0, %s125
    %s128 = sphi 0, %s127
    %s142 = sphi 0, %s128
    %s146 = sphi 0, %s146
    %s148 = sphi 0, %s146
    %s149 = sphi 0, %s148
    %s163 = sphi 0, %s149
    %s167 = sphi 0, %s167
    %s169 = sphi 0, %s167
    %s170 = sphi 0, %s169
    %s184 = sphi 0, %s170
    %s188 = sphi 0, %s188
    %s190 = sphi 0, %s188
    %s191 = sphi 0, %s190
    %s205 = sphi 0, %s191
    %s209 = sphi 0, %s209
    %s211 = sphi 0, %s209
    %s212 = sphi 0, %s211
    %s226 = sphi 0, %s212
    %s230 = sphi 0, %s230
    %s232 = sphi 0, %s230
    %s233 = sphi 0, %s232
    %s247 = sphi 0, %s233
    %s251 = sphi 0, %s251
    %s253 = sphi 0, %s251
    %s254 = sphi 0, %s253
    %s268 = sphi 0, %s254
    %s272 = sphi 0, %s272
    %s274 = sphi 0, %s272
    %s275 = sphi 0, %s274
    %s289 = sphi 0, %s275
    %s293 = sphi 0, %s293
    %s295 = sphi 0, %s293
    %s296 = sphi 0, %s295
    %s310 = sphi 0, %s296
    %s314 = sphi 0, %s314
    %s316 = sphi 0, %s314
    %s317 = sphi 0, %s316
    %s331 = sphi 0, %s317
    %s335 = sphi 0, %s335
    %s337 = sphi 0, %s335
    %s338 = sphi 0, %s337
    %s352 = sphi 0, %s338
    %s356 = sphi 0, %s356
    %s358 = sphi 0, %s356
    %s359 = sphi 0, %s358
    %s373 = sphi 0, %s359
    %s377 = sphi 0, %s377
    %s379 = sphi 0, %s377
    %s380 = sphi 0, %s379
    %s394 = sphi 0, %s380
    %s400 = sphi 0, %s402
    %s403 = sphi 0, %s400
    %s404 = sphi 0, %s403
    %s420 = sphi 0, %s404
  $region4: #{scalemae_forward.1} parent=0 // loop_header_branch
    %26 = sbr.rel (%p24) target = $region8
  $region5: #{scalemae_forward.1} parent=0 // loop_body
    %s28 = ssub.s32 %s23, 1
    %s29 = ssub.s32 %s23, 2
    %s30 = sadd.s32 %s23, 1
    %s31 = ssub.s32 %s23, %s30
    %p32 = scmp.eq.s32.totalorder %s31, 0
    %s34 = sadd.s32 %s33, 1
    %s35 = scalar_select %p32, %s33, %s34
    %p38 = pneg %p32
    %p39 = scmp.eq.s32.totalorder %s23, 1
    %p40 = por %p38, %p39
    %p41 = scmp.ne.s32.totalorder %s33, %s36
    %p42 = scmp.eq.s32.totalorder %s23, 0
    %p43 = por %p41, %p42
    %p44 = scmp.ne.s32.totalorder %s33, %s36
    %p45 = scmp.eq.s32.totalorder %s28, 1
    %p46 = por %p44, %p45
    %p47 = scmp.ne.s32.totalorder %s36, %s37
    %p48 = scmp.eq.s32.totalorder %s28, 0
    %p49 = por %p47, %p48
    %p50 = scmp.ne.s32.totalorder %s36, %s37
    %p51 = scmp.eq.s32.totalorder %s29, 1
    %p52 = por %p50, %p51
    %p54 = scmp.ne.s32.totalorder %s37, %s53
    %p55 = scmp.eq.s32.totalorder %s29, 0
    %p56 = por %p54, %p55
    %s58 = sadd.s32 %s57, 1
    %p61 = scmp.eq.s32.totalorder %s23, 1
    %p62 = scmp.ne.s32.totalorder %s57, %s59
    %p63 = scmp.eq.s32.totalorder %s23, 0
    %p64 = por %p62, %p63
    %p65 = scmp.ne.s32.totalorder %s57, %s59
    %p66 = scmp.eq.s32.totalorder %s28, 1
    %p67 = por %p65, %p66
    %p68 = scmp.ne.s32.totalorder %s59, %s60
    %p69 = scmp.eq.s32.totalorder %s28, 0
    %p70 = por %p68, %p69
    %p71 = scmp.ne.s32.totalorder %s59, %s60
    %p72 = scmp.eq.s32.totalorder %s29, 1
    %p73 = por %p71, %p72
    %p75 = scmp.ne.s32.totalorder %s60, %s74
    %p76 = scmp.eq.s32.totalorder %s29, 0
    %p77 = por %p75, %p76
    %s78 = ssub.s32 %s23, %s30
    %p79 = scmp.eq.s32.totalorder %s78, 0
    %s81 = sadd.s32 %s80, 1
    %s82 = scalar_select %p79, %s80, %s81
    %p85 = pneg %p79
    %p86 = scmp.eq.s32.totalorder %s23, 1
    %p87 = por %p85, %p86
    %p88 = scmp.ne.s32.totalorder %s80, %s83
    %p89 = scmp.eq.s32.totalorder %s23, 0
    %p90 = por %p88, %p89
    %p91 = scmp.ne.s32.totalorder %s80, %s83
    %p92 = scmp.eq.s32.totalorder %s28, 1
    %p93 = por %p91, %p92
    %p94 = scmp.ne.s32.totalorder %s83, %s84
    %p95 = scmp.eq.s32.totalorder %s28, 0
    %p96 = por %p94, %p95
    %p97 = scmp.ne.s32.totalorder %s83, %s84
    %p98 = scmp.eq.s32.totalorder %s29, 1
    %p99 = por %p97, %p98
    %p101 = scmp.ne.s32.totalorder %s84, %s100
    %p102 = scmp.eq.s32.totalorder %s29, 0
    %p103 = por %p101, %p102
    %s105 = sadd.s32 %s104, 1
    %p108 = scmp.eq.s32.totalorder %s23, 1
    %p109 = scmp.ne.s32.totalorder %s104, %s106
    %p110 = scmp.eq.s32.totalorder %s23, 0
    %p111 = por %p109, %p110
    %p112 = scmp.ne.s32.totalorder %s104, %s106
    %p113 = scmp.eq.s32.totalorder %s28, 1
    %p114 = por %p112, %p113
    %p115 = scmp.ne.s32.totalorder %s106, %s107
    %p116 = scmp.eq.s32.totalorder %s28, 0
    %p117 = por %p115, %p116
    %p118 = scmp.ne.s32.totalorder %s106, %s107
    %p119 = scmp.eq.s32.totalorder %s29, 1
    %p120 = por %p118, %p119
    %p122 = scmp.ne.s32.totalorder %s107, %s121
    %p123 = scmp.eq.s32.totalorder %s29, 0
    %p124 = por %p122, %p123
    %s126 = sadd.s32 %s125, 1
    %p129 = scmp.eq.s32.totalorder %s23, 1
    %p130 = scmp.ne.s32.totalorder %s125, %s127
    %p131 = scmp.eq.s32.totalorder %s23, 0
    %p132 = por %p130, %p131
    %p133 = scmp.ne.s32.totalorder %s125, %s127
    %p134 = scmp.eq.s32.totalorder %s28, 1
    %p135 = por %p133, %p134
    %p136 = scmp.ne.s32.totalorder %s127, %s128
    %p137 = scmp.eq.s32.totalorder %s28, 0
    %p138 = por %p136, %p137
    %p139 = scmp.ne.s32.totalorder %s127, %s128
    %p140 = scmp.eq.s32.totalorder %s29, 1
    %p141 = por %p139, %p140
    %p143 = scmp.ne.s32.totalorder %s128, %s142
    %p144 = scmp.eq.s32.totalorder %s29, 0
    %p145 = por %p143, %p144
    %s147 = sadd.s32 %s146, 1
    %p150 = scmp.eq.s32.totalorder %s23, 1
    %p151 = scmp.ne.s32.totalorder %s146, %s148
    %p152 = scmp.eq.s32.totalorder %s23, 0
    %p153 = por %p151, %p152
    %p154 = scmp.ne.s32.totalorder %s146, %s148
    %p155 = scmp.eq.s32.totalorder %s28, 1
    %p156 = por %p154, %p155
    %p157 = scmp.ne.s32.totalorder %s148, %s149
    %p158 = scmp.eq.s32.totalorder %s28, 0
    %p159 = por %p157, %p158
    %p160 = scmp.ne.s32.totalorder %s148, %s149
    %p161 = scmp.eq.s32.totalorder %s29, 1
    %p162 = por %p160, %p161
    %p164 = scmp.ne.s32.totalorder %s149, %s163
    %p165 = scmp.eq.s32.totalorder %s29, 0
    %p166 = por %p164, %p165
    %s168 = sadd.s32 %s167, 1
    %p171 = scmp.eq.s32.totalorder %s23, 1
    %p172 = scmp.ne.s32.totalorder %s167, %s169
    %p173 = scmp.eq.s32.totalorder %s23, 0
    %p174 = por %p172, %p173
    %p175 = scmp.ne.s32.totalorder %s167, %s169
    %p176 = scmp.eq.s32.totalorder %s28, 1
    %p177 = por %p175, %p176
    %p178 = scmp.ne.s32.totalorder %s169, %s170
    %p179 = scmp.eq.s32.totalorder %s28, 0
    %p180 = por %p178, %p179
    %p181 = scmp.ne.s32.totalorder %s169, %s170
    %p182 = scmp.eq.s32.totalorder %s29, 1
    %p183 = por %p181, %p182
    %p185 = scmp.ne.s32.totalorder %s170, %s184
    %p186 = scmp.eq.s32.totalorder %s29, 0
    %p187 = por %p185, %p186
    %s189 = sadd.s32 %s188, 1
    %p192 = scmp.eq.s32.totalorder %s23, 1
    %p193 = scmp.ne.s32.totalorder %s188, %s190
    %p194 = scmp.eq.s32.totalorder %s23, 0
    %p195 = por %p193, %p194
    %p196 = scmp.ne.s32.totalorder %s188, %s190
    %p197 = scmp.eq.s32.totalorder %s28, 1
    %p198 = por %p196, %p197
    %p199 = scmp.ne.s32.totalorder %s190, %s191
    %p200 = scmp.eq.s32.totalorder %s28, 0
    %p201 = por %p199, %p200
    %p202 = scmp.ne.s32.totalorder %s190, %s191
    %p203 = scmp.eq.s32.totalorder %s29, 1
    %p204 = por %p202, %p203
    %p206 = scmp.ne.s32.totalorder %s191, %s205
    %p207 = scmp.eq.s32.totalorder %s29, 0
    %p208 = por %p206, %p207
    %s210 = sadd.s32 %s209, 1
    %p213 = scmp.eq.s32.totalorder %s23, 1
    %p214 = scmp.ne.s32.totalorder %s209, %s211
    %p215 = scmp.eq.s32.totalorder %s23, 0
    %p216 = por %p214, %p215
    %p217 = scmp.ne.s32.totalorder %s209, %s211
    %p218 = scmp.eq.s32.totalorder %s28, 1
    %p219 = por %p217, %p218
    %p220 = scmp.ne.s32.totalorder %s211, %s212
    %p221 = scmp.eq.s32.totalorder %s28, 0
    %p222 = por %p220, %p221
    %p223 = scmp.ne.s32.totalorder %s211, %s212
    %p224 = scmp.eq.s32.totalorder %s29, 1
    %p225 = por %p223, %p224
    %p227 = scmp.ne.s32.totalorder %s212, %s226
    %p228 = scmp.eq.s32.totalorder %s29, 0
    %p229 = por %p227, %p228
    %s231 = sadd.s32 %s230, 1
    %p234 = scmp.eq.s32.totalorder %s23, 1
    %p235 = scmp.ne.s32.totalorder %s230, %s232
    %p236 = scmp.eq.s32.totalorder %s23, 0
    %p237 = por %p235, %p236
    %p238 = scmp.ne.s32.totalorder %s230, %s232
    %p239 = scmp.eq.s32.totalorder %s28, 1
    %p240 = por %p238, %p239
    %p241 = scmp.ne.s32.totalorder %s232, %s233
    %p242 = scmp.eq.s32.totalorder %s28, 0
    %p243 = por %p241, %p242
    %p244 = scmp.ne.s32.totalorder %s232, %s233
    %p245 = scmp.eq.s32.totalorder %s29, 1
    %p246 = por %p244, %p245
    %p248 = scmp.ne.s32.totalorder %s233, %s247
    %p249 = scmp.eq.s32.totalorder %s29, 0
    %p250 = por %p248, %p249
    %s252 = sadd.s32 %s251, 1
    %p255 = scmp.eq.s32.totalorder %s23, 1
    %p256 = scmp.ne.s32.totalorder %s251, %s253
    %p257 = scmp.eq.s32.totalorder %s23, 0
    %p258 = por %p256, %p257
    %p259 = scmp.ne.s32.totalorder %s251, %s253
    %p260 = scmp.eq.s32.totalorder %s28, 1
    %p261 = por %p259, %p260
    %p262 = scmp.ne.s32.totalorder %s253, %s254
    %p263 = scmp.eq.s32.totalorder %s28, 0
    %p264 = por %p262, %p263
    %p265 = scmp.ne.s32.totalorder %s253, %s254
    %p266 = scmp.eq.s32.totalorder %s29, 1
    %p267 = por %p265, %p266
    %p269 = scmp.ne.s32.totalorder %s254, %s268
    %p270 = scmp.eq.s32.totalorder %s29, 0
    %p271 = por %p269, %p270
    %s273 = sadd.s32 %s272, 1
    %p276 = scmp.eq.s32.totalorder %s23, 1
    %p277 = scmp.ne.s32.totalorder %s272, %s274
    %p278 = scmp.eq.s32.totalorder %s23, 0
    %p279 = por %p277, %p278
    %p280 = scmp.ne.s32.totalorder %s272, %s274
    %p281 = scmp.eq.s32.totalorder %s28, 1
    %p282 = por %p280, %p281
    %p283 = scmp.ne.s32.totalorder %s274, %s275
    %p284 = scmp.eq.s32.totalorder %s28, 0
    %p285 = por %p283, %p284
    %p286 = scmp.ne.s32.totalorder %s274, %s275
    %p287 = scmp.eq.s32.totalorder %s29, 1
    %p288 = por %p286, %p287
    %p290 = scmp.ne.s32.totalorder %s275, %s289
    %p291 = scmp.eq.s32.totalorder %s29, 0
    %p292 = por %p290, %p291
    %s294 = sadd.s32 %s293, 1
    %p297 = scmp.eq.s32.totalorder %s23, 1
    %p298 = scmp.ne.s32.totalorder %s293, %s295
    %p299 = scmp.eq.s32.totalorder %s23, 0
    %p300 = por %p298, %p299
    %p301 = scmp.ne.s32.totalorder %s293, %s295
    %p302 = scmp.eq.s32.totalorder %s28, 1
    %p303 = por %p301, %p302
    %p304 = scmp.ne.s32.totalorder %s295, %s296
    %p305 = scmp.eq.s32.totalorder %s28, 0
    %p306 = por %p304, %p305
    %p307 = scmp.ne.s32.totalorder %s295, %s296
    %p308 = scmp.eq.s32.totalorder %s29, 1
    %p309 = por %p307, %p308
    %p311 = scmp.ne.s32.totalorder %s296, %s310
    %p312 = scmp.eq.s32.totalorder %s29, 0
    %p313 = por %p311, %p312
    %s315 = sadd.s32 %s314, 1
    %p318 = scmp.eq.s32.totalorder %s23, 1
    %p319 = scmp.ne.s32.totalorder %s314, %s316
    %p320 = scmp.eq.s32.totalorder %s23, 0
    %p321 = por %p319, %p320
    %p322 = scmp.ne.s32.totalorder %s314, %s316
    %p323 = scmp.eq.s32.totalorder %s28, 1
    %p324 = por %p322, %p323
    %p325 = scmp.ne.s32.totalorder %s316, %s317
    %p326 = scmp.eq.s32.totalorder %s28, 0
    %p327 = por %p325, %p326
    %p328 = scmp.ne.s32.totalorder %s316, %s317
    %p329 = scmp.eq.s32.totalorder %s29, 1
    %p330 = por %p328, %p329
    %p332 = scmp.ne.s32.totalorder %s317, %s331
    %p333 = scmp.eq.s32.totalorder %s29, 0
    %p334 = por %p332, %p333
    %s336 = sadd.s32 %s335, 1
    %p339 = scmp.eq.s32.totalorder %s23, 1
    %p340 = scmp.ne.s32.totalorder %s335, %s337
    %p341 = scmp.eq.s32.totalorder %s23, 0
    %p342 = por %p340, %p341
    %p343 = scmp.ne.s32.totalorder %s335, %s337
    %p344 = scmp.eq.s32.totalorder %s28, 1
    %p345 = por %p343, %p344
    %p346 = scmp.ne.s32.totalorder %s337, %s338
    %p347 = scmp.eq.s32.totalorder %s28, 0
    %p348 = por %p346, %p347
    %p349 = scmp.ne.s32.totalorder %s337, %s338
    %p350 = scmp.eq.s32.totalorder %s29, 1
    %p351 = por %p349, %p350
    %p353 = scmp.ne.s32.totalorder %s338, %s352
    %p354 = scmp.eq.s32.totalorder %s29, 0
    %p355 = por %p353, %p354
    %s357 = sadd.s32 %s356, 1
    %p360 = scmp.eq.s32.totalorder %s23, 1
    %p361 = scmp.ne.s32.totalorder %s356, %s358
    %p362 = scmp.eq.s32.totalorder %s23, 0
    %p363 = por %p361, %p362
    %p364 = scmp.ne.s32.totalorder %s356, %s358
    %p365 = scmp.eq.s32.totalorder %s28, 1
    %p366 = por %p364, %p365
    %p367 = scmp.ne.s32.totalorder %s358, %s359
    %p368 = scmp.eq.s32.totalorder %s28, 0
    %p369 = por %p367, %p368
    %p370 = scmp.ne.s32.totalorder %s358, %s359
    %p371 = scmp.eq.s32.totalorder %s29, 1
    %p372 = por %p370, %p371
    %p374 = scmp.ne.s32.totalorder %s359, %s373
    %p375 = scmp.eq.s32.totalorder %s29, 0
    %p376 = por %p374, %p375
    %s378 = sadd.s32 %s377, 1
    %p381 = scmp.eq.s32.totalorder %s23, 1
    %p382 = scmp.ne.s32.totalorder %s377, %s379
    %p383 = scmp.eq.s32.totalorder %s23, 0
    %p384 = por %p382, %p383
    %p385 = scmp.ne.s32.totalorder %s377, %s379
    %p386 = scmp.eq.s32.totalorder %s28, 1
    %p387 = por %p385, %p386
    %p388 = scmp.ne.s32.totalorder %s379, %s380
    %p389 = scmp.eq.s32.totalorder %s28, 0
    %p390 = por %p388, %p389
    %p391 = scmp.ne.s32.totalorder %s379, %s380
    %p392 = scmp.eq.s32.totalorder %s29, 1
    %p393 = por %p391, %p392
    %p395 = scmp.ne.s32.totalorder %s380, %s394
    %p396 = scmp.eq.s32.totalorder %s29, 0
    %p397 = por %p395, %p396
    %s398 = ssub.s32 %s23, %s30
    %p399 = scmp.eq.s32.totalorder %s398, 0
    %s401 = sadd.s32 %s400, 1
    %s402 = scalar_select %p399, %s400, %s401
    %p405 = pneg %p399
    %p406 = scmp.eq.s32.totalorder %s23, 1
    %p407 = por %p405, %p406
    %p408 = scmp.ne.s32.totalorder %s400, %s403
    %p409 = scmp.eq.s32.totalorder %s23, 0
    %p410 = por %p408, %p409
    %p411 = scmp.ne.s32.totalorder %s400, %s403
    %p412 = scmp.eq.s32.totalorder %s28, 1
    %p413 = por %p411, %p412
    %p414 = scmp.ne.s32.totalorder %s403, %s404
    %p415 = scmp.eq.s32.totalorder %s28, 0
    %p416 = por %p414, %p415
    %p417 = scmp.ne.s32.totalorder %s403, %s404
    %p418 = scmp.eq.s32.totalorder %s29, 1
    %p419 = por %p417, %p418
    %p421 = scmp.ne.s32.totalorder %s404, %s420
    %p422 = scmp.eq.s32.totalorder %s29, 0
    %p423 = por %p421, %p422
    %p424 = scmp.le.s32.totalorder 1, %s23
    %p425 = scmp.lt.s32.totalorder %s23, 3
    %p426 = pnand %p424, %p425
    %p427 = pneg %p426
    // Predicated region
    $region9: #{scalemae_forward.1} parent=5 // pred_check
      _
    $region10: #{scalemae_forward.1} parent=5 // pred_check_branch
      %429 = sbr.rel (%p426) target = $region12
    $region11: #{scalemae_forward.1} parent=5 // pred_region
      %s430 = ssub.s32 %s23, 1
      // Predicated region
      $region13: #{scalemae_forward.1} parent=11 // pred_check
        %p431 = pneg %p70
      $region14: #{scalemae_forward.1} parent=11 // pred_check_branch
        %433 = sbr.rel (%p431) target = $region16
      $region15: #{scalemae_forward.1} parent=11 // pred_region
        _
      $region16: #{scalemae_forward.1} parent=11 // pred_fallthru
        _
      // Predicated region
      $region17: #{scalemae_forward.1} parent=11 // pred_check
        %p434 = pneg %p117
      $region18: #{scalemae_forward.1} parent=11 // pred_check_branch
        %436 = sbr.rel (%p434) target = $region20
      $region19: #{scalemae_forward.1} parent=11 // pred_region
        _
      $region20: #{scalemae_forward.1} parent=11 // pred_fallthru
        _
      // Predicated region
      $region21: #{scalemae_forward.1} parent=11 // pred_check
        %p437 = pneg %p138
      $region22: #{scalemae_forward.1} parent=11 // pred_check_branch
        %439 = sbr.rel (%p437) target = $region24
      $region23: #{scalemae_forward.1} parent=11 // pred_region
        _
      $region24: #{scalemae_forward.1} parent=11 // pred_fallthru
        _
      // Predicated region
      $region25: #{scalemae_forward.1} parent=11 // pred_check
        %p440 = pneg %p159
      $region26: #{scalemae_forward.1} parent=11 // pred_check_branch
        %442 = sbr.rel (%p440) target = $region28
      $region27: #{scalemae_forward.1} parent=11 // pred_region
        _
      $region28: #{scalemae_forward.1} parent=11 // pred_fallthru
        _
      // Predicated region
      $region29: #{scalemae_forward.1} parent=11 // pred_check
        %p443 = pneg %p180
      $region30: #{scalemae_forward.1} parent=11 // pred_check_branch
        %445 = sbr.rel (%p443) target = $region32
      $region31: #{scalemae_forward.1} parent=11 // pred_region
        _
      $region32: #{scalemae_forward.1} parent=11 // pred_fallthru
        _
      // Predicated region
      $region33: #{scalemae_forward.1} parent=11 // pred_check
        %p446 = pneg %p201
      $region34: #{scalemae_forward.1} parent=11 // pred_check_branch
        %448 = sbr.rel (%p446) target = $region36
      $region35: #{scalemae_forward.1} parent=11 // pred_region
        _
      $region36: #{scalemae_forward.1} parent=11 // pred_fallthru
        _
      // Predicated region
      $region37: #{scalemae_forward.1} parent=11 // pred_check
        %p449 = pneg %p222
      $region38: #{scalemae_forward.1} parent=11 // pred_check_branch
        %451 = sbr.rel (%p449) target = $region40
      $region39: #{scalemae_forward.1} parent=11 // pred_region
        _
      $region40: #{scalemae_forward.1} parent=11 // pred_fallthru
        _
      // Predicated region
      $region41: #{scalemae_forward.1} parent=11 // pred_check
        %p452 = pneg %p243
      $region42: #{scalemae_forward.1} parent=11 // pred_check_branch
        %454 = sbr.rel (%p452) target = $region44
      $region43: #{scalemae_forward.1} parent=11 // pred_region
        _
      $region44: #{scalemae_forward.1} parent=11 // pred_fallthru
        _
      // Predicated region
      $region45: #{scalemae_forward.1} parent=11 // pred_check
        %p455 = pneg %p264
      $region46: #{scalemae_forward.1} parent=11 // pred_check_branch
        %457 = sbr.rel (%p455) target = $region48
      $region47: #{scalemae_forward.1} parent=11 // pred_region
        _
      $region48: #{scalemae_forward.1} parent=11 // pred_fallthru
        _
      // Predicated region
      $region49: #{scalemae_forward.1} parent=11 // pred_check
        %p458 = pneg %p285
      $region50: #{scalemae_forward.1} parent=11 // pred_check_branch
        %460 = sbr.rel (%p458) target = $region52
      $region51: #{scalemae_forward.1} parent=11 // pred_region
        _
      $region52: #{scalemae_forward.1} parent=11 // pred_fallthru
        _
      // Predicated region
      $region53: #{scalemae_forward.1} parent=11 // pred_check
        %p461 = pneg %p306
      $region54: #{scalemae_forward.1} parent=11 // pred_check_branch
        %463 = sbr.rel (%p461) target = $region56
      $region55: #{scalemae_forward.1} parent=11 // pred_region
        _
      $region56: #{scalemae_forward.1} parent=11 // pred_fallthru
        _
      // Predicated region
      $region57: #{scalemae_forward.1} parent=11 // pred_check
        %p464 = pneg %p327
      $region58: #{scalemae_forward.1} parent=11 // pred_check_branch
        %466 = sbr.rel (%p464) target = $region60
      $region59: #{scalemae_forward.1} parent=11 // pred_region
        _
      $region60: #{scalemae_forward.1} parent=11 // pred_fallthru
        _
      // Predicated region
      $region61: #{scalemae_forward.1} parent=11 // pred_check
        %p467 = pneg %p348
      $region62: #{scalemae_forward.1} parent=11 // pred_check_branch
        %469 = sbr.rel (%p467) target = $region64
      $region63: #{scalemae_forward.1} parent=11 // pred_region
        _
      $region64: #{scalemae_forward.1} parent=11 // pred_fallthru
        _
      // Predicated region
      $region65: #{scalemae_forward.1} parent=11 // pred_check
        %p470 = pneg %p369
      $region66: #{scalemae_forward.1} parent=11 // pred_check_branch
        %472 = sbr.rel (%p470) target = $region68
      $region67: #{scalemae_forward.1} parent=11 // pred_region
        _
      $region68: #{scalemae_forward.1} parent=11 // pred_fallthru
        _
      // Predicated region
      $region69: #{scalemae_forward.1} parent=11 // pred_check
        %p473 = pneg %p390
      $region70: #{scalemae_forward.1} parent=11 // pred_check_branch
        %475 = sbr.rel (%p473) target = $region72
      $region71: #{scalemae_forward.1} parent=11 // pred_region
        _
      $region72: #{scalemae_forward.1} parent=11 // pred_fallthru
        _
    $region12: #{scalemae_forward.1} parent=5 // pred_fallthru
      _
    %p476 = scmp.lt.s32.totalorder %s23, 2
    // Predicated region
    $region73: #{scalemae_forward.1} parent=5 // pred_check
      %p477 = pneg %p476
    $region74: #{scalemae_forward.1} parent=5 // pred_check_branch
      %479 = sbr.rel (%p477) target = $region76
    $region75: #{scalemae_forward.1} parent=5 // pred_region
      // Predicated region
      $region77: #{scalemae_forward.1} parent=75 // pred_check
        %p480 = pneg %p43
      $region78: #{scalemae_forward.1} parent=75 // pred_check_branch
        %482 = sbr.rel (%p480) target = $region80
      $region79: #{scalemae_forward.1} parent=75 // pred_region
        %p483 = scmp.lt.s32.totalorder %s23, 1
        %s484 = scalar_select %p483, %s23, 1
        %s485 = smul.addr %s484, 2
        %s486 = smul.addr %s485, 8
        %s487 = scalar_lea.vmem %s0, %s486
      $region80: #{scalemae_forward.1} parent=75 // pred_fallthru
        _
      // Predicated region
      $region81: #{scalemae_forward.1} parent=75 // pred_check
        %p488 = pneg %p90
      $region82: #{scalemae_forward.1} parent=75 // pred_check_branch
        %490 = sbr.rel (%p488) target = $region84
      $region83: #{scalemae_forward.1} parent=75 // pred_region
        %p491 = scmp.lt.s32.totalorder %s23, 1
        %s492 = scalar_select %p491, %s23, 1
        %s493 = smul.addr %s492, 8
        %s494 = scalar_lea.vmem %s2, %s493
      $region84: #{scalemae_forward.1} parent=75 // pred_fallthru
        _
    $region76: #{scalemae_forward.1} parent=5 // pred_fallthru
      _
    %p495 = scmp.le.s32.totalorder 1, %s23
    %p496 = scmp.lt.s32.totalorder %s23, 3
    %p497 = pnand %p495, %p496
    %p498 = pneg %p497
    // Predicated region
    $region85: #{scalemae_forward.1} parent=5 // pred_check
      _
    $region86: #{scalemae_forward.1} parent=5 // pred_check_branch
      %500 = sbr.rel (%p497) target = $region88
    $region87: #{scalemae_forward.1} parent=5 // pred_region
      %s501 = ssub.s32 %s23, 1
      %p502 = scmp.lt.s32.totalorder %s28, 1
      %s503 = scalar_select %p502, %s28, 1
      %s504 = smul.addr %s503, 2
      %s505 = smul.addr %s504, 8
      %s506 = scalar_lea.vmem %s0, %s505
      %p507 = pneg %p49
      %p508 = pneg %p46
      %p509 = pneg %p70
      %p510 = pneg %p67
      %p511 = scmp.lt.s32.totalorder %s28, 1
      %s512 = scalar_select %p511, %s28, 1
      %s513 = smul.addr %s512, 8
      %s514 = scalar_lea.vmem %s2, %s513
      %p515 = pneg %p96
      %p516 = pneg %p93
      %p517 = pneg %p117
      %p518 = pneg %p114
      %p519 = pneg %p138
      %p520 = pneg %p135
      %p521 = pneg %p159
      %p522 = pneg %p156
      %p523 = pneg %p180
      %p524 = pneg %p177
      %p525 = pneg %p201
      %p526 = pneg %p198
      %p527 = pneg %p222
      %p528 = pneg %p219
      %p529 = pneg %p243
      %p530 = pneg %p240
      %p531 = pneg %p264
      %p532 = pneg %p261
      %p533 = pneg %p285
      %p534 = pneg %p282
      %p535 = pneg %p306
      %p536 = pneg %p303
      %p537 = pneg %p327
      %p538 = pneg %p324
      %p539 = pneg %p348
      %p540 = pneg %p345
      %p541 = pneg %p369
      %p542 = pneg %p366
      %p543 = pneg %p390
      %p544 = pneg %p387
      %p545 = pneg %p416
      %p546 = pneg %p413
      %p547 = scmp.lt.s32.totalorder %s28, 1
      %s548 = scalar_select %p547, %s28, 1
      %s549 = smul.addr %s548, 8
      %s550 = scalar_lea.vmem %s17, %s549
      %p551 = scmp.lt.s32.totalorder %s28, 1
      %s552 = scalar_select %p551, %s28, 1
      %s553 = smul.addr %s552, 2
      %s554 = smul.addr %s553, 8
      %s555 = scalar_lea.vmem %s0, %s554
      %p556 = scmp.lt.s32.totalorder %s28, 1
      %s557 = scalar_select %p556, %s28, 1
      %s558 = smul.addr %s557, 8
      %s559 = scalar_lea.vmem %s2, %s558
      %p560 = scmp.lt.s32.totalorder %s28, 1
      %s561 = scalar_select %p560, %s28, 1
      %s562 = smul.addr %s561, 8
      %s563 = scalar_lea.vmem %s17, %s562
      %v564 = vld [vmem:[%s555] sm:$0xff]
      %v565 = vld [vmem:[%s555 + $0x8] sm:$0xff]
      %v566 = vld [vmem:[%s1] sm:$0xff]
      %v567 = vld [vmem:[%s1 + $0x8] sm:$0xff]
      %v568 = vld [vmem:[%s1 + $0x10] sm:$0xff]
      %v569 = vld [vmem:[%s1 + $0x18] sm:$0xff]
      %v570 = vld [vmem:[%s1 + $0x20] sm:$0xff]
      %v571 = vld [vmem:[%s1 + $0x28] sm:$0xff]
      %v572 = vld [vmem:[%s1 + $0x30] sm:$0xff]
      %v573 = vld [vmem:[%s1 + $0x38] sm:$0xff]
      %v574 = vld [vmem:[%s1 + $0x40] sm:$0xff]
      %v575 = vld [vmem:[%s1 + $0x48] sm:$0xff]
      %v576 = vld [vmem:[%s1 + $0x50] sm:$0xff]
      %v577 = vld [vmem:[%s1 + $0x58] sm:$0xff]
      %v578 = vld [vmem:[%s1 + $0x60] sm:$0xff]
      %v579 = vld [vmem:[%s1 + $0x68] sm:$0xff]
      %v580 = vld [vmem:[%s1 + $0x70] sm:$0xff]
      %v581 = vld [vmem:[%s1 + $0x78] sm:$0xff]
      %v582 = vld [vmem:[%s1 + $0x80] sm:$0xff]
      %v583 = vld [vmem:[%s1 + $0x88] sm:$0xff]
      %v584 = vld [vmem:[%s1 + $0x90] sm:$0xff]
      %v585 = vld [vmem:[%s1 + $0x98] sm:$0xff]
      %v586 = vld [vmem:[%s1 + $0xa0] sm:$0xff]
      %v587 = vld [vmem:[%s1 + $0xa8] sm:$0xff]
      %v588 = vld [vmem:[%s1 + $0xb0] sm:$0xff]
      %v589 = vld [vmem:[%s1 + $0xb8] sm:$0xff]
      %v590 = vld [vmem:[%s559] sm:$0xff]
      %vm591 = vcmask 523264
      %v593 = vsel %vm591, %v565, 0
      %595 = vmatpush.msra.mxu0 %v581
      %596 = vmatpush.msra.mxu0 %v580
      %597 = vmatpush.msra.mxu0 %v579
      %598 = vmatpush.msra.mxu0 %v578
      %599 = vmatpush.msra.mxu0 %v577
      %600 = vmatpush.msra.mxu0 %v576
      %601 = vmatpush.msra.mxu0 %v575
      %602 = vmatpush.msra.mxu0 %v574
      %603 = vmatpush.msra.mxu0 %v573
      %604 = vmatpush.msra.mxu0 %v572
      %605 = vmatpush.msra.mxu0 %v571
      %606 = vmatpush.msra.mxu0 %v570
      %607 = vmatpush.msra.mxu0 %v569
      %608 = vmatpush.msra.mxu0 %v568
      %609 = vmatpush.msra.mxu0 %v567
      %610 = vmatpush.msra.mxu0 %v566
      %611 = vmatmul.f32.gmra.mxu0 %v564
      %v612 = vpop.f32.mrf.mxu0
      %v613 = vadd.f32 %v590, %v612
      %614 = vdwg.mxu0
      %615 = vmatpush.msra.mxu0 0.0
      %616 = vmatpush.msra.mxu0 0.0
      %617 = vmatpush.msra.mxu0 0.0
      %618 = vmatpush.msra.mxu0 0.0
      %619 = vmatpush.msra.mxu0 0.0
      %620 = vmatpush.msra.mxu0 0.0
      %621 = vmatpush.msra.mxu0 0.0
      %622 = vmatpush.msra.mxu0 0.0
      %623 = vmatpush.msra.mxu0 %v589
      %624 = vmatpush.msra.mxu0 %v588
      %625 = vmatpush.msra.mxu0 %v587
      %626 = vmatpush.msra.mxu0 %v586
      %627 = vmatpush.msra.mxu0 %v585
      %628 = vmatpush.msra.mxu0 %v584
      %629 = vmatpush.msra.mxu0 %v583
      %630 = vmatpush.msra.mxu0 %v582
      %631 = vmatmul.f32.gmra.mxu0 %v593
      %v632 = vpop.f32.mrf.mxu0
      %v633 = vadd.f32 %v613, %v632
      %634 = vdwg.mxu0
      %v635 = vlaneseq
      %v636 = vand.u32 %v635, 127
      %vm637 = vcmp.lt.s32.totalorder %v636, 5
      %v638 = vsel %vm637, 0.0, -1e+30
      %v639 = vld [vmem:[%s3] sm:$0x1]
      %v640 = vld [vmem:[%s4] sm:$0x1]
      %vm641 = vcmask 261120
      %v642 = vsel %vm641, %v633, 0.0
      %643 = vadd.xlane.f32.xlu0 %v642
      %v644 = vpop.xlane.xlu0 %643
      %v645 = vrcp.pop 32.0
      %v646 = vmul.f32 32.0, %v645
      %v647 = vsub.f32 1.0, %v646
      %v648 = vmul.f32 %v645, %v647
      %v649 = vadd.f32 %v645, %v648
      %vm650 = vweird.f32 %v645
      %v651 = vsel %vm650, %v645, %v649
      %v652 = vmul.f32 %v644, %v651
      %v653 = vsub.f32 %v633, %v652
      %v654 = vmul.f32 %v653, %v653
      %v655 = vsel %vm641, %v654, 0.0
      %656 = vadd.xlane.f32.xlu0 %v655
      %v657 = vpop.xlane.xlu0 %656
      %v658 = vmul.f32 %v657, %v651
      %v659 = vadd.f32 %v658, 1e-06
      %v660 = vrsqrt.pop %v659
      %v661 = vmul.f32 %v660, %v659
      %v662 = vmul.f32 %v661, %v660
      %v663 = vmul.f32 0.5, %v662
      %v664 = vsub.f32 1.5, %v663
      %v665 = vmul.f32 %v660, %v664
      %vm666 = vweird.f32 %v659
      %vm667 = vweird.f32 %v660
      %vm668 = vmor %vm666, %vm667
      %v669 = vsel %vm668, %v660, %v665
      %v670 = vmul.f32 %v653, %v669
      %v672 = vperm.slane %v639, 0
      %v674 = vmul.f32 %v670, %v672
      %v676 = vperm.slane %v640, 0
      %v678 = vadd.f32 %v674, %v676
      %v679 = vld [vmem:[%s5] sm:$0xff]
      %v680 = vld [vmem:[%s5 + $0x8] sm:$0xff]
      %v681 = vld [vmem:[%s5 + $0x10] sm:$0xff]
      %v682 = vld [vmem:[%s5 + $0x18] sm:$0xff]
      %v683 = vld [vmem:[%s6] sm:$0x1]
      %v685 = vperm.slane %v683, 0
      %v688 = vsel %vm641, %v678, 0
      %690 = vmatpush.msra.mxu0 0.0
      %691 = vmatpush.msra.mxu0 0.0
      %692 = vmatpush.msra.mxu0 0.0
      %693 = vmatpush.msra.mxu0 0.0
      %694 = vmatpush.msra.mxu0 0.0
      %695 = vmatpush.msra.mxu0 0.0
      %696 = vmatpush.msra.mxu0 0.0
      %697 = vmatpush.msra.mxu0 0.0
      %698 = vmatpush.msra.mxu0 0.0
      %699 = vmatpush.msra.mxu0 0.0
      %700 = vmatpush.msra.mxu0 0.0
      %701 = vmatpush.msra.mxu0 0.0
      %702 = vmatpush.msra.mxu0 %v682
      %703 = vmatpush.msra.mxu0 %v681
      %704 = vmatpush.msra.mxu0 %v680
      %705 = vmatpush.msra.mxu0 %v679
      %706 = vmatmul.f32.gmra.mxu0 %v688
      %v707 = vpop.f32.mrf.mxu0
      %v708 = vadd.f32 %v685, %v707
      %709 = vdwg.mxu0
      %711 = vrot.lane.b32.xlu0 %v708, 96
      %v712 = vpop.permute.xlu0 %711
      %vm713 = vcmask 64512
      %v714 = vsel %vm713, %v708, 0
      %v716 = vsel %vm713, %v712, 0
      %718 = vmatpush.xpose.msra.mxu0 0.0
      %719 = vmatpush.xpose.msra.mxu0 0.0
      %720 = vmatpush.xpose.msra.mxu0 0.0
      %721 = vmatpush.xpose.msra.mxu0 0.0
      %722 = vmatpush.xpose.msra.mxu0 0.0
      %723 = vmatpush.xpose.msra.mxu0 0.0
      %724 = vmatpush.xpose.msra.mxu0 0.0
      %725 = vmatpush.xpose.msra.mxu0 0.0
      %726 = vmatpush.xpose.msra.mxu0 0.0
      %727 = vmatpush.xpose.msra.mxu0 0.0
      %728 = vmatpush.xpose.msra.mxu0 0.0
      %729 = vmatpush.xpose.msra.mxu0 0.0
      %730 = vmatpush.xpose.msra.mxu0 0.0
      %731 = vmatpush.xpose.msra.mxu0 0.0
      %732 = vmatpush.xpose.msra.mxu0 0.0
      %733 = vmatpush.xpose.msra.mxu0 %v716
      %734 = vmatmul.f32.gmra.mxu0 %v714
      %v735 = vpop.f32.mrf.mxu0
      %v736 = vadd.f32 %v638, %v735
      %737 = vdwg.mxu0
      %v738 = vsel %vm713, %v736, -inf
      %739 = vmax.xlane.f32.xlu0 %v738
      %v740 = vpop.xlane.xlu0 %739
      %v741 = vsub.f32 %v736, %v740
      %v742 = vmul.f32 %v741, 1.442695
      %v743 = vpow.pop %v742
      %v744 = vsel %vm713, %v743, 0.0
      %745 = vadd.xlane.f32.xlu0 %v744
      %v746 = vpop.xlane.xlu0 %745
      %v747 = vrcp.pop %v746
      %v748 = vmul.f32 %v743, %v747
      %749 = vrot.lane.b32.xlu0 %v708, 64
      %v750 = vpop.permute.xlu0 %749
      %v753 = vsel %vm713, %v748, 0
      %755 = vmatpush.msra.mxu0 0.0
      %756 = vmatpush.msra.mxu0 0.0
      %757 = vmatpush.msra.mxu0 0.0
      %758 = vmatpush.msra.mxu0 0.0
      %759 = vmatpush.msra.mxu0 0.0
      %760 = vmatpush.msra.mxu0 0.0
      %761 = vmatpush.msra.mxu0 0.0
      %762 = vmatpush.msra.mxu0 0.0
      %763 = vmatpush.msra.mxu0 0.0
      %764 = vmatpush.msra.mxu0 0.0
      %765 = vmatpush.msra.mxu0 0.0
      %766 = vmatpush.msra.mxu0 0.0
      %767 = vmatpush.msra.mxu0 0.0
      %768 = vmatpush.msra.mxu0 0.0
      %769 = vmatpush.msra.mxu0 0.0
      %770 = vmatpush.msra.mxu0 %v750
      %771 = vmatmul.f32.gmra.mxu0 %v753
      %v772 = vpop.f32.mrf.mxu0
      %v773 = vadd.f32 0.0, %v772
      %774 = vdwg.mxu0
      %775 = vrot.lane.b32.xlu0 %v708, 120
      %v776 = vpop.permute.xlu0 %775
      %777 = vrot.lane.b32.xlu0 %v708, 88
      %v778 = vpop.permute.xlu0 %777
      %v779 = vsel %vm713, %v776, 0
      %v781 = vsel %vm713, %v778, 0
      %783 = vmatpush.xpose.msra.mxu0 0.0
      %784 = vmatpush.xpose.msra.mxu0 0.0
      %785 = vmatpush.xpose.msra.mxu0 0.0
      %786 = vmatpush.xpose.msra.mxu0 0.0
      %787 = vmatpush.xpose.msra.mxu0 0.0
      %788 = vmatpush.xpose.msra.mxu0 0.0
      %789 = vmatpush.xpose.msra.mxu0 0.0
      %790 = vmatpush.xpose.msra.mxu0 0.0
      %791 = vmatpush.xpose.msra.mxu0 0.0
      %792 = vmatpush.xpose.msra.mxu0 0.0
      %793 = vmatpush.xpose.msra.mxu0 0.0
      %794 = vmatpush.xpose.msra.mxu0 0.0
      %795 = vmatpush.xpose.msra.mxu0 0.0
      %796 = vmatpush.xpose.msra.mxu0 0.0
      %797 = vmatpush.xpose.msra.mxu0 0.0
      %798 = vmatpush.xpose.msra.mxu0 %v781
      %799 = vmatmul.f32.gmra.mxu0 %v779
      %v800 = vpop.f32.mrf.mxu0
      %v801 = vadd.f32 %v638, %v800
      %802 = vdwg.mxu0
      %v803 = vsel %vm713, %v801, -inf
      %804 = vmax.xlane.f32.xlu0 %v803
      %v805 = vpop.xlane.xlu0 %804
      %v806 = vsub.f32 %v801, %v805
      %v807 = vmul.f32 %v806, 1.442695
      %v808 = vpow.pop %v807
      %v809 = vsel %vm713, %v808, 0.0
      %810 = vadd.xlane.f32.xlu0 %v809
      %v811 = vpop.xlane.xlu0 %810
      %v812 = vrcp.pop %v811
      %v813 = vmul.f32 %v808, %v812
      %814 = vrot.lane.b32.xlu0 %v708, 56
      %v815 = vpop.permute.xlu0 %814
      %v818 = vsel %vm713, %v813, 0
      %820 = vmatpush.msra.mxu0 0.0
      %821 = vmatpush.msra.mxu0 0.0
      %822 = vmatpush.msra.mxu0 0.0
      %823 = vmatpush.msra.mxu0 0.0
      %824 = vmatpush.msra.mxu0 0.0
      %825 = vmatpush.msra.mxu0 0.0
      %826 = vmatpush.msra.mxu0 0.0
      %827 = vmatpush.msra.mxu0 0.0
      %828 = vmatpush.msra.mxu0 0.0
      %829 = vmatpush.msra.mxu0 0.0
      %830 = vmatpush.msra.mxu0 0.0
      %831 = vmatpush.msra.mxu0 0.0
      %832 = vmatpush.msra.mxu0 0.0
      %833 = vmatpush.msra.mxu0 0.0
      %834 = vmatpush.msra.mxu0 0.0
      %835 = vmatpush.msra.mxu0 %v815
      %836 = vmatmul.f32.gmra.mxu0 %v818
      %v837 = vpop.f32.mrf.mxu0
      %v838 = vadd.f32 0.0, %v837
      %839 = vdwg.mxu0
      %840 = vrot.lane.b32.xlu0 %v708, 112
      %v841 = vpop.permute.xlu0 %840
      %842 = vrot.lane.b32.xlu0 %v708, 80
      %v843 = vpop.permute.xlu0 %842
      %v844 = vsel %vm713, %v841, 0
      %v846 = vsel %vm713, %v843, 0
      %848 = vmatpush.xpose.msra.mxu0 0.0
      %849 = vmatpush.xpose.msra.mxu0 0.0
      %850 = vmatpush.xpose.msra.mxu0 0.0
      %851 = vmatpush.xpose.msra.mxu0 0.0
      %852 = vmatpush.xpose.msra.mxu0 0.0
      %853 = vmatpush.xpose.msra.mxu0 0.0
      %854 = vmatpush.xpose.msra.mxu0 0.0
      %855 = vmatpush.xpose.msra.mxu0 0.0
      %856 = vmatpush.xpose.msra.mxu0 0.0
      %857 = vmatpush.xpose.msra.mxu0 0.0
      %858 = vmatpush.xpose.msra.mxu0 0.0
      %859 = vmatpush.xpose.msra.mxu0 0.0
      %860 = vmatpush.xpose.msra.mxu0 0.0
      %861 = vmatpush.xpose.msra.mxu0 0.0
      %862 = vmatpush.xpose.msra.mxu0 0.0
      %863 = vmatpush.xpose.msra.mxu0 %v846
      %864 = vmatmul.f32.gmra.mxu0 %v844
      %v865 = vpop.f32.mrf.mxu0
      %v866 = vadd.f32 %v638, %v865
      %867 = vdwg.mxu0
      %v868 = vsel %vm713, %v866, -inf
      %869 = vmax.xlane.f32.xlu0 %v868
      %v870 = vpop.xlane.xlu0 %869
      %v871 = vsub.f32 %v866, %v870
      %v872 = vmul.f32 %v871, 1.442695
      %v873 = vpow.pop %v872
      %v874 = vsel %vm713, %v873, 0.0
      %875 = vadd.xlane.f32.xlu0 %v874
      %v876 = vpop.xlane.xlu0 %875
      %v877 = vrcp.pop %v876
      %v878 = vmul.f32 %v873, %v877
      %879 = vrot.lane.b32.xlu0 %v708, 48
      %v880 = vpop.permute.xlu0 %879
      %v883 = vsel %vm713, %v878, 0
      %885 = vmatpush.msra.mxu0 0.0
      %886 = vmatpush.msra.mxu0 0.0
      %887 = vmatpush.msra.mxu0 0.0
      %888 = vmatpush.msra.mxu0 0.0
      %889 = vmatpush.msra.mxu0 0.0
      %890 = vmatpush.msra.mxu0 0.0
      %891 = vmatpush.msra.mxu0 0.0
      %892 = vmatpush.msra.mxu0 0.0
      %893 = vmatpush.msra.mxu0 0.0
      %894 = vmatpush.msra.mxu0 0.0
      %895 = vmatpush.msra.mxu0 0.0
      %896 = vmatpush.msra.mxu0 0.0
      %897 = vmatpush.msra.mxu0 0.0
      %898 = vmatpush.msra.mxu0 0.0
      %899 = vmatpush.msra.mxu0 0.0
      %900 = vmatpush.msra.mxu0 %v880
      %901 = vmatmul.f32.gmra.mxu0 %v883
      %v902 = vpop.f32.mrf.mxu0
      %v903 = vadd.f32 0.0, %v902
      %904 = vdwg.mxu0
      %905 = vrot.lane.b32.xlu0 %v708, 104
      %v906 = vpop.permute.xlu0 %905
      %907 = vrot.lane.b32.xlu0 %v708, 72
      %v908 = vpop.permute.xlu0 %907
      %v909 = vsel %vm713, %v906, 0
      %v911 = vsel %vm713, %v908, 0
      %913 = vmatpush.xpose.msra.mxu0 0.0
      %914 = vmatpush.xpose.msra.mxu0 0.0
      %915 = vmatpush.xpose.msra.mxu0 0.0
      %916 = vmatpush.xpose.msra.mxu0 0.0
      %917 = vmatpush.xpose.msra.mxu0 0.0
      %918 = vmatpush.xpose.msra.mxu0 0.0
      %919 = vmatpush.xpose.msra.mxu0 0.0
      %920 = vmatpush.xpose.msra.mxu0 0.0
      %921 = vmatpush.xpose.msra.mxu0 0.0
      %922 = vmatpush.xpose.msra.mxu0 0.0
      %923 = vmatpush.xpose.msra.mxu0 0.0
      %924 = vmatpush.xpose.msra.mxu0 0.0
      %925 = vmatpush.xpose.msra.mxu0 0.0
      %926 = vmatpush.xpose.msra.mxu0 0.0
      %927 = vmatpush.xpose.msra.mxu0 0.0
      %928 = vmatpush.xpose.msra.mxu0 %v911
      %929 = vmatmul.f32.gmra.mxu0 %v909
      %v930 = vpop.f32.mrf.mxu0
      %v931 = vadd.f32 %v638, %v930
      %932 = vdwg.mxu0
      %v933 = vsel %vm713, %v931, -inf
      %934 = vmax.xlane.f32.xlu0 %v933
      %v935 = vpop.xlane.xlu0 %934
      %v936 = vsub.f32 %v931, %v935
      %v937 = vmul.f32 %v936, 1.442695
      %v938 = vpow.pop %v937
      %v939 = vsel %vm713, %v938, 0.0
      %940 = vadd.xlane.f32.xlu0 %v939
      %v941 = vpop.xlane.xlu0 %940
      %v942 = vrcp.pop %v941
      %v943 = vmul.f32 %v938, %v942
      %944 = vrot.lane.b32.xlu0 %v708, 40
      %v945 = vpop.permute.xlu0 %944
      %v948 = vsel %vm713, %v943, 0
      %950 = vmatpush.msra.mxu0 0.0
      %951 = vmatpush.msra.mxu0 0.0
      %952 = vmatpush.msra.mxu0 0.0
      %953 = vmatpush.msra.mxu0 0.0
      %954 = vmatpush.msra.mxu0 0.0
      %955 = vmatpush.msra.mxu0 0.0
      %956 = vmatpush.msra.mxu0 0.0
      %957 = vmatpush.msra.mxu0 0.0
      %958 = vmatpush.msra.mxu0 0.0
      %959 = vmatpush.msra.mxu0 0.0
      %960 = vmatpush.msra.mxu0 0.0
      %961 = vmatpush.msra.mxu0 0.0
      %962 = vmatpush.msra.mxu0 0.0
      %963 = vmatpush.msra.mxu0 0.0
      %964 = vmatpush.msra.mxu0 0.0
      %965 = vmatpush.msra.mxu0 %v945
      %966 = vmatmul.f32.gmra.mxu0 %v948
      %v967 = vpop.f32.mrf.mxu0
      %v968 = vadd.f32 0.0, %v967
      %969 = vdwg.mxu0
      %971 = vrot.lane.b32.xlu0 %v838, 8
      %v972 = vpop.permute.xlu0 %971
      %975 = vrot.lane.b32.xlu0 %v903, 16
      %v976 = vpop.permute.xlu0 %975
      %979 = vrot.lane.b32.xlu0 %v968, 24
      %v980 = vpop.permute.xlu0 %979
      %v982 = vsel %vm713, %v773, %v972
      %vm983 = vcmask 130048
      %v984 = vsel %vm983, %v982, %v976
      %vm985 = vcmask 195584
      %v986 = vsel %vm985, %v984, %v980
      %v987 = vld [vmem:[%s7] sm:$0xff]
      %v988 = vld [vmem:[%s7 + $0x8] sm:$0xff]
      %v989 = vld [vmem:[%s7 + $0x10] sm:$0xff]
      %v990 = vld [vmem:[%s7 + $0x18] sm:$0xff]
      %v992 = vsel %vm641, %v986, 0
      %994 = vmatpush.msra.mxu0 0.0
      %995 = vmatpush.msra.mxu0 0.0
      %996 = vmatpush.msra.mxu0 0.0
      %997 = vmatpush.msra.mxu0 0.0
      %998 = vmatpush.msra.mxu0 0.0
      %999 = vmatpush.msra.mxu0 0.0
      %1000 = vmatpush.msra.mxu0 0.0
      %1001 = vmatpush.msra.mxu0 0.0
      %1002 = vmatpush.msra.mxu0 0.0
      %1003 = vmatpush.msra.mxu0 0.0
      %1004 = vmatpush.msra.mxu0 0.0
      %1005 = vmatpush.msra.mxu0 0.0
      %1006 = vmatpush.msra.mxu0 %v990
      %1007 = vmatpush.msra.mxu0 %v989
      %1008 = vmatpush.msra.mxu0 %v988
      %1009 = vmatpush.msra.mxu0 %v987
      %1010 = vmatmul.f32.gmra.mxu0 %v992
      %v1011 = vpop.f32.mrf.mxu0
      %v1012 = vadd.f32 0.0, %v1011
      %1013 = vdwg.mxu0
      %v1014 = vadd.f32 %v633, %v1012
      %v1015 = vld [vmem:[%s8] sm:$0x1]
      %v1017 = vperm.slane %v1015, 0
      %v1019 = vadd.f32 %v1014, %v1017
      %v1020 = vld [vmem:[%s9] sm:$0x1]
      %v1021 = vld [vmem:[%s10] sm:$0x1]
      %v1022 = vsel %vm641, %v1019, 0.0
      %1023 = vadd.xlane.f32.xlu0 %v1022
      %v1024 = vpop.xlane.xlu0 %1023
      %v1025 = vmul.f32 %v1024, %v651
      %v1026 = vsub.f32 %v1019, %v1025
      %v1027 = vmul.f32 %v1026, %v1026
      %v1028 = vsel %vm641, %v1027, 0.0
      %1029 = vadd.xlane.f32.xlu0 %v1028
      %v1030 = vpop.xlane.xlu0 %1029
      %v1031 = vmul.f32 %v1030, %v651
      %v1032 = vadd.f32 %v1031, 1e-06
      %v1033 = vrsqrt.pop %v1032
      %v1034 = vmul.f32 %v1033, %v1032
      %v1035 = vmul.f32 %v1034, %v1033
      %v1036 = vmul.f32 0.5, %v1035
      %v1037 = vsub.f32 1.5, %v1036
      %v1038 = vmul.f32 %v1033, %v1037
      %vm1039 = vweird.f32 %v1032
      %vm1040 = vweird.f32 %v1033
      %vm1041 = vmor %vm1039, %vm1040
      %v1042 = vsel %vm1041, %v1033, %v1038
      %v1043 = vmul.f32 %v1026, %v1042
      %v1045 = vperm.slane %v1020, 0
      %v1047 = vmul.f32 %v1043, %v1045
      %v1049 = vperm.slane %v1021, 0
      %v1051 = vadd.f32 %v1047, %v1049
      %v1052 = vld [vmem:[%s11] sm:$0xff]
      %v1053 = vld [vmem:[%s11 + $0x8] sm:$0xff]
      %v1054 = vld [vmem:[%s11 + $0x10] sm:$0xff]
      %v1055 = vld [vmem:[%s11 + $0x18] sm:$0xff]
      %v1056 = vld [vmem:[%s12] sm:$0x1]
      %v1058 = vperm.slane %v1056, 0
      %v1061 = vsel %vm641, %v1051, 0
      %1063 = vmatpush.msra.mxu0 0.0
      %1064 = vmatpush.msra.mxu0 0.0
      %1065 = vmatpush.msra.mxu0 0.0
      %1066 = vmatpush.msra.mxu0 0.0
      %1067 = vmatpush.msra.mxu0 0.0
      %1068 = vmatpush.msra.mxu0 0.0
      %1069 = vmatpush.msra.mxu0 0.0
      %1070 = vmatpush.msra.mxu0 0.0
      %1071 = vmatpush.msra.mxu0 0.0
      %1072 = vmatpush.msra.mxu0 0.0
      %1073 = vmatpush.msra.mxu0 0.0
      %1074 = vmatpush.msra.mxu0 0.0
      %1075 = vmatpush.msra.mxu0 %v1055
      %1076 = vmatpush.msra.mxu0 %v1054
      %1077 = vmatpush.msra.mxu0 %v1053
      %1078 = vmatpush.msra.mxu0 %v1052
      %1079 = vmatmul.f32.gmra.mxu0 %v1061
      %v1080 = vpop.f32.mrf.mxu0
      %v1081 = vadd.f32 %v1058, %v1080
      %1082 = vdwg.mxu0
      %v1083 = vmul.f32 %v1081, 0.5
      %v1084 = vmul.f32 %v1081, 0.70710677
      %v1085 = vmul.f32 %v1084, %v1084
      %v1086 = vmin.f32 16.0, %v1085
      %v1087 = vmul.f32 %v1086, 2.1237322e-06
      %v1088 = vadd.f32 %v1087, 0.00028619796
      %v1089 = vmul.f32 %v1086, %v1088
      %v1090 = vadd.f32 %v1089, 0.0036580483
      %v1091 = vmul.f32 %v1086, %v1090
      %v1092 = vadd.f32 %v1091, 0.05243302
      %v1093 = vmul.f32 %v1086, %v1092
      %v1094 = vadd.f32 %v1093, 0.18741608
      %v1095 = vmul.f32 %v1086, %v1094
      %v1096 = vadd.f32 %v1095, 1.1283791
      %v1097 = vmul.f32 %v1084, %v1096
      %v1098 = vmul.f32 %v1086, 3.8918573e-05
      %v1099 = vadd.f32 %v1098, 0.001143296
      %v1100 = vmul.f32 %v1086, %v1099
      %v1101 = vadd.f32 %v1100, 0.014752088
      %v1102 = vmul.f32 %v1086, %v1101
      %v1103 = vadd.f32 %v1102, 0.112945676
      %v1104 = vmul.f32 %v1086, %v1103
      %v1105 = vadd.f32 %v1104, 0.4994258
      %v1106 = vmul.f32 %v1086, %v1105
      %v1107 = vadd.f32 %v1106, 1.0
      %v1108 = vrcp.pop %v1107
      %v1109 = vmul.f32 %v1107, %v1108
      %v1110 = vsub.f32 1.0, %v1109
      %v1111 = vmul.f32 %v1108, %v1110
      %v1112 = vadd.f32 %v1108, %v1111
      %vm1113 = vweird.f32 %v1107
      %vm1114 = vweird.f32 %v1108
      %vm1115 = vmor %vm1113, %vm1114
      %v1116 = vsel %vm1115, %v1108, %v1112
      %v1117 = vand.u32 2147483647, %v1107
      %vm1118 = vcmp.eq.f32.partialorder %v1117, 8.507059e+37
      %v1119 = vand.u32 %v1107, 2147483648
      %v1120 = vor.u32 1.1754944e-38, %v1119
      %v1121 = vsel %vm1118, %v1120, %v1116
      %v1122 = vmul.f32 %v1097, %v1121
      %v1123 = vmin.f32 %v1122, 1.0
      %v1124 = vmax.f32 %v1123, -1.0
      %v1125 = vadd.f32 %v1124, 1.0
      %v1126 = vmul.f32 %v1083, %v1125
      %v1127 = vld [vmem:[%s13] sm:$0xff]
      %v1128 = vld [vmem:[%s13 + $0x8] sm:$0xff]
      %v1129 = vld [vmem:[%s13 + $0x10] sm:$0xff]
      %v1130 = vld [vmem:[%s13 + $0x18] sm:$0xff]
      %v1131 = vld [vmem:[%s13 + $0x20] sm:$0xff]
      %v1132 = vld [vmem:[%s13 + $0x28] sm:$0xff]
      %v1133 = vld [vmem:[%s13 + $0x30] sm:$0xff]
      %v1134 = vld [vmem:[%s13 + $0x38] sm:$0xff]
      %v1135 = vld [vmem:[%s13 + $0x40] sm:$0xff]
      %v1136 = vld [vmem:[%s13 + $0x48] sm:$0xff]
      %v1137 = vld [vmem:[%s13 + $0x50] sm:$0xff]
      %v1138 = vld [vmem:[%s13 + $0x58] sm:$0xff]
      %v1139 = vld [vmem:[%s13 + $0x60] sm:$0xff]
      %v1140 = vld [vmem:[%s13 + $0x68] sm:$0xff]
      %v1141 = vld [vmem:[%s13 + $0x70] sm:$0xff]
      %v1142 = vld [vmem:[%s13 + $0x78] sm:$0xff]
      %1143 = vmatpush.msra.mxu0 %v1142
      %1144 = vmatpush.msra.mxu0 %v1141
      %1145 = vmatpush.msra.mxu0 %v1140
      %1146 = vmatpush.msra.mxu0 %v1139
      %1147 = vmatpush.msra.mxu0 %v1138
      %1148 = vmatpush.msra.mxu0 %v1137
      %1149 = vmatpush.msra.mxu0 %v1136
      %1150 = vmatpush.msra.mxu0 %v1135
      %1151 = vmatpush.msra.mxu0 %v1134
      %1152 = vmatpush.msra.mxu0 %v1133
      %1153 = vmatpush.msra.mxu0 %v1132
      %1154 = vmatpush.msra.mxu0 %v1131
      %1155 = vmatpush.msra.mxu0 %v1130
      %1156 = vmatpush.msra.mxu0 %v1129
      %1157 = vmatpush.msra.mxu0 %v1128
      %1158 = vmatpush.msra.mxu0 %v1127
      %1159 = vmatmul.f32.gmra.mxu0 %v1126
      %v1160 = vpop.f32.mrf.mxu0
      %v1161 = vadd.f32 0.0, %v1160
      %1162 = vdwg.mxu0
      %v1163 = vadd.f32 %v1019, %v1161
      %v1164 = vld [vmem:[%s14] sm:$0x1]
      %v1166 = vperm.slane %v1164, 0
      %v1168 = vadd.f32 %v1163, %v1166
      %s1169 = scalar_lea.vmem %s3, 1
      %v1170 = vld [vmem:[%s1169] sm:$0x1]
      %s1171 = scalar_lea.vmem %s4, 1
      %v1172 = vld [vmem:[%s1171] sm:$0x1]
      %v1173 = vsel %vm641, %v1168, 0.0
      %1174 = vadd.xlane.f32.xlu0 %v1173
      %v1175 = vpop.xlane.xlu0 %1174
      %v1176 = vmul.f32 %v1175, %v651
      %v1177 = vsub.f32 %v1168, %v1176
      %v1178 = vmul.f32 %v1177, %v1177
      %v1179 = vsel %vm641, %v1178, 0.0
      %1180 = vadd.xlane.f32.xlu0 %v1179
      %v1181 = vpop.xlane.xlu0 %1180
      %v1182 = vmul.f32 %v1181, %v651
      %v1183 = vadd.f32 %v1182, 1e-06
      %v1184 = vrsqrt.pop %v1183
      %v1185 = vmul.f32 %v1184, %v1183
      %v1186 = vmul.f32 %v1185, %v1184
      %v1187 = vmul.f32 0.5, %v1186
      %v1188 = vsub.f32 1.5, %v1187
      %v1189 = vmul.f32 %v1184, %v1188
      %vm1190 = vweird.f32 %v1183
      %vm1191 = vweird.f32 %v1184
      %vm1192 = vmor %vm1190, %vm1191
      %v1193 = vsel %vm1192, %v1184, %v1189
      %v1194 = vmul.f32 %v1177, %v1193
      %v1196 = vperm.slane %v1170, 0
      %v1198 = vmul.f32 %v1194, %v1196
      %v1200 = vperm.slane %v1172, 0
      %v1202 = vadd.f32 %v1198, %v1200
      %s1203 = scalar_lea.vmem %s5, 32
      %v1204 = vld [vmem:[%s1203] sm:$0xff]
      %v1205 = vld [vmem:[%s1203 + $0x8] sm:$0xff]
      %v1206 = vld [vmem:[%s1203 + $0x10] sm:$0xff]
      %v1207 = vld [vmem:[%s1203 + $0x18] sm:$0xff]
      %s1208 = scalar_lea.vmem %s6, 1
      %v1209 = vld [vmem:[%s1208] sm:$0x1]
      %v1211 = vperm.slane %v1209, 0
      %v1214 = vsel %vm641, %v1202, 0
      %1216 = vmatpush.msra.mxu0 0.0
      %1217 = vmatpush.msra.mxu0 0.0
      %1218 = vmatpush.msra.mxu0 0.0
      %1219 = vmatpush.msra.mxu0 0.0
      %1220 = vmatpush.msra.mxu0 0.0
      %1221 = vmatpush.msra.mxu0 0.0
      %1222 = vmatpush.msra.mxu0 0.0
      %1223 = vmatpush.msra.mxu0 0.0
      %1224 = vmatpush.msra.mxu0 0.0
      %1225 = vmatpush.msra.mxu0 0.0
      %1226 = vmatpush.msra.mxu0 0.0
      %1227 = vmatpush.msra.mxu0 0.0
      %1228 = vmatpush.msra.mxu0 %v1207
      %1229 = vmatpush.msra.mxu0 %v1206
      %1230 = vmatpush.msra.mxu0 %v1205
      %1231 = vmatpush.msra.mxu0 %v1204
      %1232 = vmatmul.f32.gmra.mxu0 %v1214
      %v1233 = vpop.f32.mrf.mxu0
      %v1234 = vadd.f32 %v1211, %v1233
      %1235 = vdwg.mxu0
      %1237 = vrot.lane.b32.xlu0 %v1234, 96
      %v1238 = vpop.permute.xlu0 %1237
      %v1239 = vsel %vm713, %v1234, 0
      %v1241 = vsel %vm713, %v1238, 0
      %1243 = vmatpush.xpose.msra.mxu0 0.0
      %1244 = vmatpush.xpose.msra.mxu0 0.0
      %1245 = vmatpush.xpose.msra.mxu0 0.0
      %1246 = vmatpush.xpose.msra.mxu0 0.0
      %1247 = vmatpush.xpose.msra.mxu0 0.0
      %1248 = vmatpush.xpose.msra.mxu0 0.0
      %1249 = vmatpush.xpose.msra.mxu0 0.0
      %1250 = vmatpush.xpose.msra.mxu0 0.0
      %1251 = vmatpush.xpose.msra.mxu0 0.0
      %1252 = vmatpush.xpose.msra.mxu0 0.0
      %1253 = vmatpush.xpose.msra.mxu0 0.0
      %1254 = vmatpush.xpose.msra.mxu0 0.0
      %1255 = vmatpush.xpose.msra.mxu0 0.0
      %1256 = vmatpush.xpose.msra.mxu0 0.0
      %1257 = vmatpush.xpose.msra.mxu0 0.0
      %1258 = vmatpush.xpose.msra.mxu0 %v1241
      %1259 = vmatmul.f32.gmra.mxu0 %v1239
      %v1260 = vpop.f32.mrf.mxu0
      %v1261 = vadd.f32 %v638, %v1260
      %1262 = vdwg.mxu0
      %v1263 = vsel %vm713, %v1261, -inf
      %1264 = vmax.xlane.f32.xlu0 %v1263
      %v1265 = vpop.xlane.xlu0 %1264
      %v1266 = vsub.f32 %v1261, %v1265
      %v1267 = vmul.f32 %v1266, 1.442695
      %v1268 = vpow.pop %v1267
      %v1269 = vsel %vm713, %v1268, 0.0
      %1270 = vadd.xlane.f32.xlu0 %v1269
      %v1271 = vpop.xlane.xlu0 %1270
      %v1272 = vrcp.pop %v1271
      %v1273 = vmul.f32 %v1268, %v1272
      %1274 = vrot.lane.b32.xlu0 %v1234, 64
      %v1275 = vpop.permute.xlu0 %1274
      %v1278 = vsel %vm713, %v1273, 0
      %1280 = vmatpush.msra.mxu0 0.0
      %1281 = vmatpush.msra.mxu0 0.0
      %1282 = vmatpush.msra.mxu0 0.0
      %1283 = vmatpush.msra.mxu0 0.0
      %1284 = vmatpush.msra.mxu0 0.0
      %1285 = vmatpush.msra.mxu0 0.0
      %1286 = vmatpush.msra.mxu0 0.0
      %1287 = vmatpush.msra.mxu0 0.0
      %1288 = vmatpush.msra.mxu0 0.0
      %1289 = vmatpush.msra.mxu0 0.0
      %1290 = vmatpush.msra.mxu0 0.0
      %1291 = vmatpush.msra.mxu0 0.0
      %1292 = vmatpush.msra.mxu0 0.0
      %1293 = vmatpush.msra.mxu0 0.0
      %1294 = vmatpush.msra.mxu0 0.0
      %1295 = vmatpush.msra.mxu0 %v1275
      %1296 = vmatmul.f32.gmra.mxu0 %v1278
      %v1297 = vpop.f32.mrf.mxu0
      %v1298 = vadd.f32 0.0, %v1297
      %1299 = vdwg.mxu0
      %1300 = vrot.lane.b32.xlu0 %v1234, 120
      %v1301 = vpop.permute.xlu0 %1300
      %1302 = vrot.lane.b32.xlu0 %v1234, 88
      %v1303 = vpop.permute.xlu0 %1302
      %v1304 = vsel %vm713, %v1301, 0
      %v1306 = vsel %vm713, %v1303, 0
      %1308 = vmatpush.xpose.msra.mxu0 0.0
      %1309 = vmatpush.xpose.msra.mxu0 0.0
      %1310 = vmatpush.xpose.msra.mxu0 0.0
      %1311 = vmatpush.xpose.msra.mxu0 0.0
      %1312 = vmatpush.xpose.msra.mxu0 0.0
      %1313 = vmatpush.xpose.msra.mxu0 0.0
      %1314 = vmatpush.xpose.msra.mxu0 0.0
      %1315 = vmatpush.xpose.msra.mxu0 0.0
      %1316 = vmatpush.xpose.msra.mxu0 0.0
      %1317 = vmatpush.xpose.msra.mxu0 0.0
      %1318 = vmatpush.xpose.msra.mxu0 0.0
      %1319 = vmatpush.xpose.msra.mxu0 0.0
      %1320 = vmatpush.xpose.msra.mxu0 0.0
      %1321 = vmatpush.xpose.msra.mxu0 0.0
      %1322 = vmatpush.xpose.msra.mxu0 0.0
      %1323 = vmatpush.xpose.msra.mxu0 %v1306
      %1324 = vmatmul.f32.gmra.mxu0 %v1304
      %v1325 = vpop.f32.mrf.mxu0
      %v1326 = vadd.f32 %v638, %v1325
      %1327 = vdwg.mxu0
      %v1328 = vsel %vm713, %v1326, -inf
      %1329 = vmax.xlane.f32.xlu0 %v1328
      %v1330 = vpop.xlane.xlu0 %1329
      %v1331 = vsub.f32 %v1326, %v1330
      %v1332 = vmul.f32 %v1331, 1.442695
      %v1333 = vpow.pop %v1332
      %v1334 = vsel %vm713, %v1333, 0.0
      %1335 = vadd.xlane.f32.xlu0 %v1334
      %v1336 = vpop.xlane.xlu0 %1335
      %v1337 = vrcp.pop %v1336
      %v1338 = vmul.f32 %v1333, %v1337
      %1339 = vrot.lane.b32.xlu0 %v1234, 56
      %v1340 = vpop.permute.xlu0 %1339
      %v1343 = vsel %vm713, %v1338, 0
      %1345 = vmatpush.msra.mxu0 0.0
      %1346 = vmatpush.msra.mxu0 0.0
      %1347 = vmatpush.msra.mxu0 0.0
      %1348 = vmatpush.msra.mxu0 0.0
      %1349 = vmatpush.msra.mxu0 0.0
      %1350 = vmatpush.msra.mxu0 0.0
      %1351 = vmatpush.msra.mxu0 0.0
      %1352 = vmatpush.msra.mxu0 0.0
      %1353 = vmatpush.msra.mxu0 0.0
      %1354 = vmatpush.msra.mxu0 0.0
      %1355 = vmatpush.msra.mxu0 0.0
      %1356 = vmatpush.msra.mxu0 0.0
      %1357 = vmatpush.msra.mxu0 0.0
      %1358 = vmatpush.msra.mxu0 0.0
      %1359 = vmatpush.msra.mxu0 0.0
      %1360 = vmatpush.msra.mxu0 %v1340
      %1361 = vmatmul.f32.gmra.mxu0 %v1343
      %v1362 = vpop.f32.mrf.mxu0
      %v1363 = vadd.f32 0.0, %v1362
      %1364 = vdwg.mxu0
      %1365 = vrot.lane.b32.xlu0 %v1234, 112
      %v1366 = vpop.permute.xlu0 %1365
      %1367 = vrot.lane.b32.xlu0 %v1234, 80
      %v1368 = vpop.permute.xlu0 %1367
      %v1369 = vsel %vm713, %v1366, 0
      %v1371 = vsel %vm713, %v1368, 0
      %1373 = vmatpush.xpose.msra.mxu0 0.0
      %1374 = vmatpush.xpose.msra.mxu0 0.0
      %1375 = vmatpush.xpose.msra.mxu0 0.0
      %1376 = vmatpush.xpose.msra.mxu0 0.0
      %1377 = vmatpush.xpose.msra.mxu0 0.0
      %1378 = vmatpush.xpose.msra.mxu0 0.0
      %1379 = vmatpush.xpose.msra.mxu0 0.0
      %1380 = vmatpush.xpose.msra.mxu0 0.0
      %1381 = vmatpush.xpose.msra.mxu0 0.0
      %1382 = vmatpush.xpose.msra.mxu0 0.0
      %1383 = vmatpush.xpose.msra.mxu0 0.0
      %1384 = vmatpush.xpose.msra.mxu0 0.0
      %1385 = vmatpush.xpose.msra.mxu0 0.0
      %1386 = vmatpush.xpose.msra.mxu0 0.0
      %1387 = vmatpush.xpose.msra.mxu0 0.0
      %1388 = vmatpush.xpose.msra.mxu0 %v1371
      %1389 = vmatmul.f32.gmra.mxu0 %v1369
      %v1390 = vpop.f32.mrf.mxu0
      %v1391 = vadd.f32 %v638, %v1390
      %1392 = vdwg.mxu0
      %v1393 = vsel %vm713, %v1391, -inf
      %1394 = vmax.xlane.f32.xlu0 %v1393
      %v1395 = vpop.xlane.xlu0 %1394
      %v1396 = vsub.f32 %v1391, %v1395
      %v1397 = vmul.f32 %v1396, 1.442695
      %v1398 = vpow.pop %v1397
      %v1399 = vsel %vm713, %v1398, 0.0
      %1400 = vadd.xlane.f32.xlu0 %v1399
      %v1401 = vpop.xlane.xlu0 %1400
      %v1402 = vrcp.pop %v1401
      %v1403 = vmul.f32 %v1398, %v1402
      %1404 = vrot.lane.b32.xlu0 %v1234, 48
      %v1405 = vpop.permute.xlu0 %1404
      %v1408 = vsel %vm713, %v1403, 0
      %1410 = vmatpush.msra.mxu0 0.0
      %1411 = vmatpush.msra.mxu0 0.0
      %1412 = vmatpush.msra.mxu0 0.0
      %1413 = vmatpush.msra.mxu0 0.0
      %1414 = vmatpush.msra.mxu0 0.0
      %1415 = vmatpush.msra.mxu0 0.0
      %1416 = vmatpush.msra.mxu0 0.0
      %1417 = vmatpush.msra.mxu0 0.0
      %1418 = vmatpush.msra.mxu0 0.0
      %1419 = vmatpush.msra.mxu0 0.0
      %1420 = vmatpush.msra.mxu0 0.0
      %1421 = vmatpush.msra.mxu0 0.0
      %1422 = vmatpush.msra.mxu0 0.0
      %1423 = vmatpush.msra.mxu0 0.0
      %1424 = vmatpush.msra.mxu0 0.0
      %1425 = vmatpush.msra.mxu0 %v1405
      %1426 = vmatmul.f32.gmra.mxu0 %v1408
      %v1427 = vpop.f32.mrf.mxu0
      %v1428 = vadd.f32 0.0, %v1427
      %1429 = vdwg.mxu0
      %1430 = vrot.lane.b32.xlu0 %v1234, 104
      %v1431 = vpop.permute.xlu0 %1430
      %1432 = vrot.lane.b32.xlu0 %v1234, 72
      %v1433 = vpop.permute.xlu0 %1432
      %v1434 = vsel %vm713, %v1431, 0
      %v1436 = vsel %vm713, %v1433, 0
      %1438 = vmatpush.xpose.msra.mxu0 0.0
      %1439 = vmatpush.xpose.msra.mxu0 0.0
      %1440 = vmatpush.xpose.msra.mxu0 0.0
      %1441 = vmatpush.xpose.msra.mxu0 0.0
      %1442 = vmatpush.xpose.msra.mxu0 0.0
      %1443 = vmatpush.xpose.msra.mxu0 0.0
      %1444 = vmatpush.xpose.msra.mxu0 0.0
      %1445 = vmatpush.xpose.msra.mxu0 0.0
      %1446 = vmatpush.xpose.msra.mxu0 0.0
      %1447 = vmatpush.xpose.msra.mxu0 0.0
      %1448 = vmatpush.xpose.msra.mxu0 0.0
      %1449 = vmatpush.xpose.msra.mxu0 0.0
      %1450 = vmatpush.xpose.msra.mxu0 0.0
      %1451 = vmatpush.xpose.msra.mxu0 0.0
      %1452 = vmatpush.xpose.msra.mxu0 0.0
      %1453 = vmatpush.xpose.msra.mxu0 %v1436
      %1454 = vmatmul.f32.gmra.mxu0 %v1434
      %v1455 = vpop.f32.mrf.mxu0
      %v1456 = vadd.f32 %v638, %v1455
      %1457 = vdwg.mxu0
      %v1458 = vsel %vm713, %v1456, -inf
      %1459 = vmax.xlane.f32.xlu0 %v1458
      %v1460 = vpop.xlane.xlu0 %1459
      %v1461 = vsub.f32 %v1456, %v1460
      %v1462 = vmul.f32 %v1461, 1.442695
      %v1463 = vpow.pop %v1462
      %v1464 = vsel %vm713, %v1463, 0.0
      %1465 = vadd.xlane.f32.xlu0 %v1464
      %v1466 = vpop.xlane.xlu0 %1465
      %v1467 = vrcp.pop %v1466
      %v1468 = vmul.f32 %v1463, %v1467
      %1469 = vrot.lane.b32.xlu0 %v1234, 40
      %v1470 = vpop.permute.xlu0 %1469
      %v1473 = vsel %vm713, %v1468, 0
      %1475 = vmatpush.msra.mxu0 0.0
      %1476 = vmatpush.msra.mxu0 0.0
      %1477 = vmatpush.msra.mxu0 0.0
      %1478 = vmatpush.msra.mxu0 0.0
      %1479 = vmatpush.msra.mxu0 0.0
      %1480 = vmatpush.msra.mxu0 0.0
      %1481 = vmatpush.msra.mxu0 0.0
      %1482 = vmatpush.msra.mxu0 0.0
      %1483 = vmatpush.msra.mxu0 0.0
      %1484 = vmatpush.msra.mxu0 0.0
      %1485 = vmatpush.msra.mxu0 0.0
      %1486 = vmatpush.msra.mxu0 0.0
      %1487 = vmatpush.msra.mxu0 0.0
      %1488 = vmatpush.msra.mxu0 0.0
      %1489 = vmatpush.msra.mxu0 0.0
      %1490 = vmatpush.msra.mxu0 %v1470
      %1491 = vmatmul.f32.gmra.mxu0 %v1473
      %v1492 = vpop.f32.mrf.mxu0
      %v1493 = vadd.f32 0.0, %v1492
      %1494 = vdwg.mxu0
      %1496 = vrot.lane.b32.xlu0 %v1363, 8
      %v1497 = vpop.permute.xlu0 %1496
      %1500 = vrot.lane.b32.xlu0 %v1428, 16
      %v1501 = vpop.permute.xlu0 %1500
      %1504 = vrot.lane.b32.xlu0 %v1493, 24
      %v1505 = vpop.permute.xlu0 %1504
      %v1507 = vsel %vm713, %v1298, %v1497
      %v1508 = vsel %vm983, %v1507, %v1501
      %v1509 = vsel %vm985, %v1508, %v1505
      %s1510 = scalar_lea.vmem %s7, 32
      %v1511 = vld [vmem:[%s1510] sm:$0xff]
      %v1512 = vld [vmem:[%s1510 + $0x8] sm:$0xff]
      %v1513 = vld [vmem:[%s1510 + $0x10] sm:$0xff]
      %v1514 = vld [vmem:[%s1510 + $0x18] sm:$0xff]
      %v1516 = vsel %vm641, %v1509, 0
      %1518 = vmatpush.msra.mxu0 0.0
      %1519 = vmatpush.msra.mxu0 0.0
      %1520 = vmatpush.msra.mxu0 0.0
      %1521 = vmatpush.msra.mxu0 0.0
      %1522 = vmatpush.msra.mxu0 0.0
      %1523 = vmatpush.msra.mxu0 0.0
      %1524 = vmatpush.msra.mxu0 0.0
      %1525 = vmatpush.msra.mxu0 0.0
      %1526 = vmatpush.msra.mxu0 0.0
      %1527 = vmatpush.msra.mxu0 0.0
      %1528 = vmatpush.msra.mxu0 0.0
      %1529 = vmatpush.msra.mxu0 0.0
      %1530 = vmatpush.msra.mxu0 %v1514
      %1531 = vmatpush.msra.mxu0 %v1513
      %1532 = vmatpush.msra.mxu0 %v1512
      %1533 = vmatpush.msra.mxu0 %v1511
      %1534 = vmatmul.f32.gmra.mxu0 %v1516
      %v1535 = vpop.f32.mrf.mxu0
      %v1536 = vadd.f32 0.0, %v1535
      %1537 = vdwg.mxu0
      %v1538 = vadd.f32 %v1168, %v1536
      %s1539 = scalar_lea.vmem %s8, 1
      %v1540 = vld [vmem:[%s1539] sm:$0x1]
      %v1542 = vperm.slane %v1540, 0
      %v1544 = vadd.f32 %v1538, %v1542
      %s1545 = scalar_lea.vmem %s9, 1
      %v1546 = vld [vmem:[%s1545] sm:$0x1]
      %s1547 = scalar_lea.vmem %s10, 1
      %v1548 = vld [vmem:[%s1547] sm:$0x1]
      %v1549 = vsel %vm641, %v1544, 0.0
      %1550 = vadd.xlane.f32.xlu0 %v1549
      %v1551 = vpop.xlane.xlu0 %1550
      %v1552 = vmul.f32 %v1551, %v651
      %v1553 = vsub.f32 %v1544, %v1552
      %v1554 = vmul.f32 %v1553, %v1553
      %v1555 = vsel %vm641, %v1554, 0.0
      %1556 = vadd.xlane.f32.xlu0 %v1555
      %v1557 = vpop.xlane.xlu0 %1556
      %v1558 = vmul.f32 %v1557, %v651
      %v1559 = vadd.f32 %v1558, 1e-06
      %v1560 = vrsqrt.pop %v1559
      %v1561 = vmul.f32 %v1560, %v1559
      %v1562 = vmul.f32 %v1561, %v1560
      %v1563 = vmul.f32 0.5, %v1562
      %v1564 = vsub.f32 1.5, %v1563
      %v1565 = vmul.f32 %v1560, %v1564
      %vm1566 = vweird.f32 %v1559
      %vm1567 = vweird.f32 %v1560
      %vm1568 = vmor %vm1566, %vm1567
      %v1569 = vsel %vm1568, %v1560, %v1565
      %v1570 = vmul.f32 %v1553, %v1569
      %v1572 = vperm.slane %v1546, 0
      %v1574 = vmul.f32 %v1570, %v1572
      %v1576 = vperm.slane %v1548, 0
      %v1578 = vadd.f32 %v1574, %v1576
      %s1579 = scalar_lea.vmem %s11, 32
      %v1580 = vld [vmem:[%s1579] sm:$0xff]
      %v1581 = vld [vmem:[%s1579 + $0x8] sm:$0xff]
      %v1582 = vld [vmem:[%s1579 + $0x10] sm:$0xff]
      %v1583 = vld [vmem:[%s1579 + $0x18] sm:$0xff]
      %s1584 = scalar_lea.vmem %s12, 1
      %v1585 = vld [vmem:[%s1584] sm:$0x1]
      %v1587 = vperm.slane %v1585, 0
      %v1590 = vsel %vm641, %v1578, 0
      %1592 = vmatpush.msra.mxu0 0.0
      %1593 = vmatpush.msra.mxu0 0.0
      %1594 = vmatpush.msra.mxu0 0.0
      %1595 = vmatpush.msra.mxu0 0.0
      %1596 = vmatpush.msra.mxu0 0.0
      %1597 = vmatpush.msra.mxu0 0.0
      %1598 = vmatpush.msra.mxu0 0.0
      %1599 = vmatpush.msra.mxu0 0.0
      %1600 = vmatpush.msra.mxu0 0.0
      %1601 = vmatpush.msra.mxu0 0.0
      %1602 = vmatpush.msra.mxu0 0.0
      %1603 = vmatpush.msra.mxu0 0.0
      %1604 = vmatpush.msra.mxu0 %v1583
      %1605 = vmatpush.msra.mxu0 %v1582
      %1606 = vmatpush.msra.mxu0 %v1581
      %1607 = vmatpush.msra.mxu0 %v1580
      %1608 = vmatmul.f32.gmra.mxu0 %v1590
      %v1609 = vpop.f32.mrf.mxu0
      %v1610 = vadd.f32 %v1587, %v1609
      %1611 = vdwg.mxu0
      %v1612 = vmul.f32 %v1610, 0.5
      %v1613 = vmul.f32 %v1610, 0.70710677
      %v1614 = vmul.f32 %v1613, %v1613
      %v1615 = vmin.f32 16.0, %v1614
      %v1616 = vmul.f32 %v1615, 2.1237322e-06
      %v1617 = vadd.f32 %v1616, 0.00028619796
      %v1618 = vmul.f32 %v1615, %v1617
      %v1619 = vadd.f32 %v1618, 0.0036580483
      %v1620 = vmul.f32 %v1615, %v1619
      %v1621 = vadd.f32 %v1620, 0.05243302
      %v1622 = vmul.f32 %v1615, %v1621
      %v1623 = vadd.f32 %v1622, 0.18741608
      %v1624 = vmul.f32 %v1615, %v1623
      %v1625 = vadd.f32 %v1624, 1.1283791
      %v1626 = vmul.f32 %v1613, %v1625
      %v1627 = vmul.f32 %v1615, 3.8918573e-05
      %v1628 = vadd.f32 %v1627, 0.001143296
      %v1629 = vmul.f32 %v1615, %v1628
      %v1630 = vadd.f32 %v1629, 0.014752088
      %v1631 = vmul.f32 %v1615, %v1630
      %v1632 = vadd.f32 %v1631, 0.112945676
      %v1633 = vmul.f32 %v1615, %v1632
      %v1634 = vadd.f32 %v1633, 0.4994258
      %v1635 = vmul.f32 %v1615, %v1634
      %v1636 = vadd.f32 %v1635, 1.0
      %v1637 = vrcp.pop %v1636
      %v1638 = vmul.f32 %v1636, %v1637
      %v1639 = vsub.f32 1.0, %v1638
      %v1640 = vmul.f32 %v1637, %v1639
      %v1641 = vadd.f32 %v1637, %v1640
      %vm1642 = vweird.f32 %v1636
      %vm1643 = vweird.f32 %v1637
      %vm1644 = vmor %vm1642, %vm1643
      %v1645 = vsel %vm1644, %v1637, %v1641
      %v1646 = vand.u32 2147483647, %v1636
      %vm1647 = vcmp.eq.f32.partialorder %v1646, 8.507059e+37
      %v1648 = vand.u32 %v1636, 2147483648
      %v1649 = vor.u32 1.1754944e-38, %v1648
      %v1650 = vsel %vm1647, %v1649, %v1645
      %v1651 = vmul.f32 %v1626, %v1650
      %v1652 = vmin.f32 %v1651, 1.0
      %v1653 = vmax.f32 %v1652, -1.0
      %v1654 = vadd.f32 %v1653, 1.0
      %v1655 = vmul.f32 %v1612, %v1654
      %s1656 = scalar_lea.vmem %s13, 128
      %v1657 = vld [vmem:[%s1656] sm:$0xff]
      %v1658 = vld [vmem:[%s1656 + $0x8] sm:$0xff]
      %v1659 = vld [vmem:[%s1656 + $0x10] sm:$0xff]
      %v1660 = vld [vmem:[%s1656 + $0x18] sm:$0xff]
      %v1661 = vld [vmem:[%s1656 + $0x20] sm:$0xff]
      %v1662 = vld [vmem:[%s1656 + $0x28] sm:$0xff]
      %v1663 = vld [vmem:[%s1656 + $0x30] sm:$0xff]
      %v1664 = vld [vmem:[%s1656 + $0x38] sm:$0xff]
      %v1665 = vld [vmem:[%s1656 + $0x40] sm:$0xff]
      %v1666 = vld [vmem:[%s1656 + $0x48] sm:$0xff]
      %v1667 = vld [vmem:[%s1656 + $0x50] sm:$0xff]
      %v1668 = vld [vmem:[%s1656 + $0x58] sm:$0xff]
      %v1669 = vld [vmem:[%s1656 + $0x60] sm:$0xff]
      %v1670 = vld [vmem:[%s1656 + $0x68] sm:$0xff]
      %v1671 = vld [vmem:[%s1656 + $0x70] sm:$0xff]
      %v1672 = vld [vmem:[%s1656 + $0x78] sm:$0xff]
      %1673 = vmatpush.msra.mxu0 %v1672
      %1674 = vmatpush.msra.mxu0 %v1671
      %1675 = vmatpush.msra.mxu0 %v1670
      %1676 = vmatpush.msra.mxu0 %v1669
      %1677 = vmatpush.msra.mxu0 %v1668
      %1678 = vmatpush.msra.mxu0 %v1667
      %1679 = vmatpush.msra.mxu0 %v1666
      %1680 = vmatpush.msra.mxu0 %v1665
      %1681 = vmatpush.msra.mxu0 %v1664
      %1682 = vmatpush.msra.mxu0 %v1663
      %1683 = vmatpush.msra.mxu0 %v1662
      %1684 = vmatpush.msra.mxu0 %v1661
      %1685 = vmatpush.msra.mxu0 %v1660
      %1686 = vmatpush.msra.mxu0 %v1659
      %1687 = vmatpush.msra.mxu0 %v1658
      %1688 = vmatpush.msra.mxu0 %v1657
      %1689 = vmatmul.f32.gmra.mxu0 %v1655
      %v1690 = vpop.f32.mrf.mxu0
      %v1691 = vadd.f32 0.0, %v1690
      %1692 = vdwg.mxu0
      %v1693 = vadd.f32 %v1544, %v1691
      %s1694 = scalar_lea.vmem %s14, 1
      %v1695 = vld [vmem:[%s1694] sm:$0x1]
      %v1697 = vperm.slane %v1695, 0
      %v1699 = vadd.f32 %v1693, %v1697
      %v1700 = vld [vmem:[%s15] sm:$0x1]
      %v1701 = vld [vmem:[%s16] sm:$0x1]
      %v1702 = vsel %vm641, %v1699, 0.0
      %1703 = vadd.xlane.f32.xlu0 %v1702
      %v1704 = vpop.xlane.xlu0 %1703
      %v1705 = vmul.f32 %v1704, %v651
      %v1706 = vsub.f32 %v1699, %v1705
      %v1707 = vmul.f32 %v1706, %v1706
      %v1708 = vsel %vm641, %v1707, 0.0
      %1709 = vadd.xlane.f32.xlu0 %v1708
      %v1710 = vpop.xlane.xlu0 %1709
      %v1711 = vmul.f32 %v1710, %v651
      %v1712 = vadd.f32 %v1711, 1e-06
      %v1713 = vrsqrt.pop %v1712
      %v1714 = vmul.f32 %v1713, %v1712
      %v1715 = vmul.f32 %v1714, %v1713
      %v1716 = vmul.f32 0.5, %v1715
      %v1717 = vsub.f32 1.5, %v1716
      %v1718 = vmul.f32 %v1713, %v1717
      %vm1719 = vweird.f32 %v1712
      %vm1720 = vweird.f32 %v1713
      %vm1721 = vmor %vm1719, %vm1720
      %v1722 = vsel %vm1721, %v1713, %v1718
      %v1723 = vmul.f32 %v1706, %v1722
      %v1725 = vperm.slane %v1700, 0
      %v1727 = vmul.f32 %v1723, %v1725
      %v1729 = vperm.slane %v1701, 0
      %v1731 = vadd.f32 %v1727, %v1729
      %1732 = vst.msk [vmem:[%s563] sm:$0xff] %vm641, %v1731
      %p1733 = scmp.lt.s32.totalorder %s28, 1
      %s1734 = scalar_select %p1733, %s28, 1
      %s1735 = smul.addr %s1734, 8
      %s1736 = scalar_lea.vmem %s17, %s1735
      // Predicated region
      $region89: #{scalemae_forward.1} parent=87 // pred_check
        %p1737 = pneg %p413
      $region90: #{scalemae_forward.1} parent=87 // pred_check_branch
        %1739 = sbr.rel (%p1737) target = $region92
      $region91: #{scalemae_forward.1} parent=87 // pred_region
        _
      $region92: #{scalemae_forward.1} parent=87 // pred_fallthru
        _
    $region88: #{scalemae_forward.1} parent=5 // pred_fallthru
      _
    %p1740 = scmp.le.s32.totalorder 2, %s23
    // Predicated region
    $region93: #{scalemae_forward.1} parent=5 // pred_check
      %p1741 = pneg %p1740
    $region94: #{scalemae_forward.1} parent=5 // pred_check_branch
      %1743 = sbr.rel (%p1741) target = $region96
    $region95: #{scalemae_forward.1} parent=5 // pred_region
      %s1744 = ssub.s32 %s23, 2
      // Predicated region
      $region97: #{scalemae_forward.1} parent=95 // pred_check
        %p1745 = pneg %p419
      $region98: #{scalemae_forward.1} parent=95 // pred_check_branch
        %1747 = sbr.rel (%p1745) target = $region100
      $region99: #{scalemae_forward.1} parent=95 // pred_region
        %p1748 = scmp.lt.s32.totalorder %s29, 1
        %s1749 = scalar_select %p1748, %s29, 1
        %s1750 = smul.addr %s1749, 8
        %s1751 = scalar_lea.vmem %s17, %s1750
      $region100: #{scalemae_forward.1} parent=95 // pred_fallthru
        _
    $region96: #{scalemae_forward.1} parent=5 // pred_fallthru
      _
  $region6: #{scalemae_forward.1} parent=0 // loop_footer
    %s27 = sadd.s32 1, %s23
  $region7: #{scalemae_forward.1} parent=0 // loop_footer_branch
    %22 = sbr.rel target = $region3
  $region8: #{scalemae_forward.1} parent=0 // loop_exit
    _

</llo_original>
